<compile_context>
chip_gen: v5e
topology: v5e:2x2
jax: 0.10.0
libtpu: 0.0.40
codegen_flags: <defaults>
</compile_context>

<pallas_src>
import jax
import jax.numpy as jnp
from jax import lax
from jax.experimental import pallas as pl
from jax.experimental.pallas import tpu as pltpu


def _round_up(x, m):
    return ((x + m - 1) // m) * m


def _choose_block_b(batch):
    """Batch block: fill MXU rows (128) but keep >=2 grid blocks when possible
    (v7x has 2 TensorCores; the grid axis is marked "parallel")."""
    target = 128
    bb = min(target, _round_up(max(1, -(-batch // 2)), 8))
    return max(8, bb)


def _gru_discriminator_kernel(x_ref,      # (T, BB, F+1)  time-major block, ones col appended
                              w_ih_ref,   # (F+1, 3*Hp)   [r|z|n] blocks; row F = folded biases
                              w_hh_ref,   # (Hp, 3*Hp)
                              b_hn_ref,   # (1, Hp)       hidden bias of n gate (stays in-loop)
                              w_out_ref,  # (Hp, 128)     head weight, only column 0 nonzero
                              b_out_ref,  # (1, 128)      head bias, only column 0 nonzero
                              logit_ref,  # (BB, 128)     column 0 = y_hat_logit
                              prob_ref,   # (BB, 128)     column 0 = y_hat
                              gx_ref):    # VMEM scratch (T, BB, 3*Hp)
    T, BB, Faug = x_ref.shape
    Hp3 = w_hh_ref.shape[1]
    Hp = Hp3 // 3
    f32 = jnp.float32

    # ---- Phase 1: hoisted input projection (biases folded via the ones row) ----
    # (T*BB, F+1) @ (F+1, 3*Hp) -> (T, BB, 3*Hp); BB is a sublane-tile multiple,
    # so the merge/split of the leading dims is layout-clean.
    x2 = x_ref[...].reshape(T * BB, Faug)
    gx_ref[...] = jnp.dot(x2, w_ih_ref[...],
                          preferred_element_type=f32).reshape(T, BB, Hp3)

    w_hh = w_hh_ref[...]

    # Two independent carries (when the block is big enough) hide the serial
    # MXU -> VPU -> EUP -> VPU -> MXU latency chain of each GRU step.
    split = (BB % 16 == 0)
    rows = BB // 2 if split else BB
    # Hoist the bias broadcast out of the recurrence (broadcast_in_dim isn't CSE'd).
    b_hn = jnp.broadcast_to(b_hn_ref[...], (rows, Hp))

    def gru_cell(h, gx_t):
        gh = jnp.dot(h, w_hh, preferred_element_type=f32)          # (rows, 3*Hp)
        # 128-lane-aligned gate slices -> whole-vreg ops, no lane masking.
        # sigmoid(a) = 0.5*(1 + tanh(a/2)): one EUP push per gate.
        r = 0.5 + 0.5 * jnp.tanh(0.5 * (gx_t[:, 0 * Hp:1 * Hp] + gh[:, 0 * Hp:1 * Hp]))
        z = 0.5 + 0.5 * jnp.tanh(0.5 * (gx_t[:, 1 * Hp:2 * Hp] + gh[:, 1 * Hp:2 * Hp]))
        n = jnp.tanh(gx_t[:, 2 * Hp:3 * Hp] + r * (gh[:, 2 * Hp:3 * Hp] + b_hn))
        return (1.0 - z) * n + z * h

    unroll = min(T, 8)

    # ---- Phase 2: recurrence over the time axis (gx_ref[t] is contiguous) ----
    if split:
        half = BB // 2

        def step(t, carry):
            ha, hb = carry
            gx_t = gx_ref[t]                                        # (BB, 3*Hp)
            return (gru_cell(ha, gx_t[:half]), gru_cell(hb, gx_t[half:]))

        ha, hb = lax.fori_loop(0, T, step,
                               (jnp.zeros((half, Hp), f32),
                                jnp.zeros((half, Hp), f32)),
                               unroll=unroll)
        h = jnp.concatenate([ha, hb], axis=0)
    else:
        def step(t, h):
            return gru_cell(h, gx_ref[t])

        h = lax.fori_loop(0, T, step, jnp.zeros((BB, Hp), f32), unroll=unroll)
    # Padded lanes of h stay exactly 0 (zero weight/bias columns), so they never
    # contaminate real lanes or the head below.

    # ---- Phase 3: head, padded to a full 128-lane output (unmasked stores) ----
    logit = jnp.dot(h, w_out_ref[...],
                    preferred_element_type=f32) + b_out_ref[...]    # (BB, 128)
    logit_ref[...] = logit
    prob_ref[...] = jax.nn.sigmoid(logit)


@jax.jit
def discriminator_forward(x, w_ih, w_hh, b_ih, b_hh, w_out, b_out):
    """Forward pass matching PyTorch Discriminator.forward.

    x:     (B, T, F) float, batch_first (PyTorch convention)
    w_ih:  (3H, F)  = rnn.weight_ih_l0   (gate order [r|z|n])
    w_hh:  (3H, H)  = rnn.weight_hh_l0
    b_ih:  (3H,)    = rnn.bias_ih_l0
    b_hh:  (3H,)    = rnn.bias_hh_l0
    w_out: (1, H)   = model.weight
    b_out: (1,)     = model.bias

    Returns (y_hat_logit, y_hat), each of shape (B, 1, 1).
    """
    B, T, F = x.shape
    H = w_hh.shape[1]
    Hp = _round_up(H, 128)
    Faug = F + 1
    f32 = jnp.float32

    block_b = _choose_block_b(B)
    Bp = _round_up(B, block_b)
    nblk = Bp // block_b

    # Time-major input + appended ones column (bias fold) + batch padding.
    # The transpose touches only B*T*F*4 bytes (F is tiny) and buys a
    # contiguous per-step gate slice inside the serial recurrence.
    x_tm = jnp.transpose(x.astype(f32), (1, 0, 2))                       # (T, B, F)
    x_aug = jnp.concatenate([x_tm, jnp.ones((T, B, 1), f32)], axis=-1)   # (T, B, F+1)
    if Bp != B:
        x_aug = jnp.pad(x_aug, ((0, 0), (0, Bp - B), (0, 0)))

    # Per-gate, 128-lane-aligned weights: gate g occupies lanes [g*Hp, g*Hp + H).
    # Row F of w_ih_p (the ones row) carries the folded biases:
    # (b_ih + b_hh) for r/z, b_in for n; b_hn stays inside r*(W_hn h + b_hn).
    w_ih_p = jnp.zeros((Faug, 3 * Hp), f32)
    w_hh_p = jnp.zeros((Hp, 3 * Hp), f32)
    for g in range(3):
        w_ih_p = w_ih_p.at[:F, g * Hp:g * Hp + H].set(
            jnp.transpose(w_ih[g * H:(g + 1) * H, :]).astype(f32))
        w_hh_p = w_hh_p.at[:H, g * Hp:g * Hp + H].set(
            jnp.transpose(w_hh[g * H:(g + 1) * H, :]).astype(f32))
    w_ih_p = w_ih_p.at[F, 0 * Hp:0 * Hp + H].set((b_ih[0:H] + b_hh[0:H]).astype(f32))
    w_ih_p = w_ih_p.at[F, 1 * Hp:1 * Hp + H].set((b_ih[H:2 * H] + b_hh[H:2 * H]).astype(f32))
    w_ih_p = w_ih_p.at[F, 2 * Hp:2 * Hp + H].set(b_ih[2 * H:3 * H].astype(f32))
    b_hn = jnp.zeros((1, Hp), f32).at[0, :H].set(b_hh[2 * H:3 * H].astype(f32))

    # Head: pad the (H, 1) weight to (Hp, 128) so the output stores are lane-dense.
    w_out_p = jnp.zeros((Hp, 128), f32).at[:H, 0].set(w_out[0, :].astype(f32))
    b_out_p = jnp.zeros((1, 128), f32).at[0, 0].set(b_out[0].astype(f32))

    # Advisory cost estimate (includes per-block weight refetch + gx traffic).
    flops = (2 * Bp * T * Faug * 3 * Hp          # hoisted input projection
             + 2 * Bp * T * Hp * 3 * Hp          # recurrence
             + 2 * Bp * Hp * 128)                # head
    transcendentals = 3 * Bp * T * Hp + Bp * 128
    w_bytes = Faug * 3 * Hp + Hp * 3 * Hp + Hp + Hp * 128 + 128
    bytes_accessed = 4 * (T * Bp * Faug + nblk * w_bytes + 2 * Bp * 128)

    # Explicit VMEM budget: x block (double-buffered), weights (double-buffered),
    # gx scratch, outputs (double-buffered). Raise the scoped limit only when
    # needed, staying well under v7x's 64 MiB physical VMEM.
    vmem_est = 4 * (2 * T * block_b * Faug
                    + 2 * w_bytes
                    + T * block_b * 3 * Hp
                    + 2 * 2 * block_b * 128)
    vmem_limit = None
    if vmem_est > 16 * 1024 * 1024:
        vmem_limit = int(min(2 * vmem_est, 48 * 1024 * 1024))

    logit_slab, prob_slab = pl.pallas_call(
        _gru_discriminator_kernel,
        out_shape=(jax.ShapeDtypeStruct((Bp, 128), f32),
                   jax.ShapeDtypeStruct((Bp, 128), f32)),
        grid=(nblk,),
        in_specs=[
            pl.BlockSpec((T, block_b, Faug), lambda i: (0, i, 0)),   # x, time-major, batch-blocked
            pl.BlockSpec((Faug, 3 * Hp), lambda i: (0, 0)),          # w_ih (+ folded-bias row)
            pl.BlockSpec((Hp, 3 * Hp), lambda i: (0, 0)),            # w_hh
            pl.BlockSpec((1, Hp), lambda i: (0, 0)),                 # b_hn
            pl.BlockSpec((Hp, 128), lambda i: (0, 0)),               # head weight
            pl.BlockSpec((1, 128), lambda i: (0, 0)),                # head bias
        ],
        out_specs=(pl.BlockSpec((block_b, 128), lambda i: (i, 0)),
                   pl.BlockSpec((block_b, 128), lambda i: (i, 0))),
        scratch_shapes=[pltpu.VMEM((T, block_b, 3 * Hp), f32)],      # gx (time-major)
        compiler_params=pltpu.CompilerParams(
            dimension_semantics=("parallel",),
            vmem_limit_bytes=vmem_limit),
        cost_estimate=pl.CostEstimate(flops=flops,
                                      transcendentals=transcendentals,
                                      bytes_accessed=bytes_accessed),
    )(x_aug, w_ih_p, w_hh_p, b_hn, w_out_p, b_out_p)

    # d_last_states: (1, B, H) -> swapaxes(0,1): (B, 1, H) -> Linear: (B, 1, 1).
    # Padded batch rows carry garbage logits and are sliced off here.
    y_hat_logit = logit_slab[:B, 0].reshape(B, 1, 1)
    y_hat = prob_slab[:B, 0].reshape(B, 1, 1)
    return y_hat_logit, y_hat


def _reference_forward(x, w_ih, w_hh, b_ih, b_hh, w_out, b_out):
    """Pure-JAX reference of the PyTorch GRU forward, for verification."""
    B, T, F = x.shape
    H = w_hh.shape[1]

    def cell(h, x_t):
        gx = x_t @ w_ih.T + b_ih
        gh = h @ w_hh.T + b_hh
        r = jax.nn.sigmoid(gx[:, :H] + gh[:, :H])
        z = jax.nn.sigmoid(gx[:, H:2 * H] + gh[:, H:2 * H])
        n = jnp.tanh(gx[:, 2 * H:] + r * gh[:, 2 * H:])
        return (1.0 - z) * n + z * h, None

    h0 = jnp.zeros((B, H), jnp.float32)
    h_last, _ = lax.scan(cell, h0, jnp.transpose(x, (1, 0, 2)))
    logit = (h_last @ w_out.T + b_out).reshape(B, 1, 1)
    return logit, jax.nn.sigmoid(logit)


if __name__ == "__main__":
    # Small shapes implied by the module: x is (batch, seq_len, input_features).
    B, T, F, H = 2, 8, 4, 32

    key = jax.random.PRNGKey(0)
    k_x, k1, k2, k3, k4, k5, k6 = jax.random.split(key, 7)

    # Deterministic parameter init (PyTorch-GRU-style uniform(-1/sqrt(H), 1/sqrt(H))).
    bound = 1.0 / jnp.sqrt(jnp.float32(H))
    w_ih = jax.random.uniform(k1, (3 * H, F), jnp.float32, -bound, bound)   # weight_ih_l0
    w_hh = jax.random.uniform(k2, (3 * H, H), jnp.float32, -bound, bound)   # weight_hh_l0
    b_ih = jax.random.uniform(k3, (3 * H,), jnp.float32, -bound, bound)     # bias_ih_l0
    b_hh = jax.random.uniform(k4, (3 * H,), jnp.float32, -bound, bound)     # bias_hh_l0
    w_out = jax.random.uniform(k5, (1, H), jnp.float32, -bound, bound)      # Linear weight
    b_out = jax.random.uniform(k6, (1,), jnp.float32, -bound, bound)        # Linear bias

    x = jax.random.normal(k_x, (B, T, F), jnp.float32)

    logit, prob = discriminator_forward(x, w_ih, w_hh, b_ih, b_hh, w_out, b_out)
    jax.block_until_ready((logit, prob))

    # Sanity check against a pure-JAX reference.
    ref_logit, ref_prob = _reference_forward(x, w_ih, w_hh, b_ih, b_hh, w_out, b_out)
    assert logit.shape == (B, 1, 1) and prob.shape == (B, 1, 1)
    assert jnp.allclose(logit, ref_logit, atol=1e-5, rtol=1e-5)
    assert jnp.allclose(prob, ref_prob, atol=1e-5, rtol=1e-5)

    # TODO(synk): Discriminator.fit() (Adam training loop, BCEWithLogitsLoss,
    # train/test split, accuracy scoring) is host-side training logic with no
    # Pallas-kernel equivalent; only forward() is implemented here.

    print("KERNEL_OK")
</pallas_src>

<mosaic_0001>
module attributes {stable_mosaic.version = 11 : i64} {
  func.func @_gru_discriminator_kernel(%arg0: i32, %arg1: memref<8x8x5xf32, #tpu.memory_space<vmem>>, %arg2: memref<5x384xf32, #tpu.memory_space<vmem>>, %arg3: memref<128x384xf32, #tpu.memory_space<vmem>>, %arg4: memref<1x128xf32, #tpu.memory_space<vmem>>, %arg5: memref<128x128xf32, #tpu.memory_space<vmem>>, %arg6: memref<1x128xf32, #tpu.memory_space<vmem>>, %arg7: memref<8x128xf32, #tpu.memory_space<vmem>>, %arg8: memref<8x128xf32, #tpu.memory_space<vmem>>, %arg9: memref<8x8x384xf32, #tpu.memory_space<vmem>>) attributes {dimension_semantics = [#tpu.dimension_semantics<parallel>], iteration_bounds = array<i64: 1>, scalar_prefetch = 0 : i64, scratch_operands = 1 : i64, tpu.core_type = #tpu.core_type<tc>, window_params = [{transform_indices = @transform_0, window_bounds = array<i64: 8, 8, 5>}, {pipeline_mode = #tpu.pipeline_mode<synchronous>, transform_indices = @transform_1, window_bounds = array<i64: 5, 384>}, {pipeline_mode = #tpu.pipeline_mode<synchronous>, transform_indices = @transform_2, window_bounds = array<i64: 128, 384>}, {pipeline_mode = #tpu.pipeline_mode<synchronous>, transform_indices = @transform_3, window_bounds = array<i64: 1, 128>}, {pipeline_mode = #tpu.pipeline_mode<synchronous>, transform_indices = @transform_4, window_bounds = array<i64: 128, 128>}, {pipeline_mode = #tpu.pipeline_mode<synchronous>, transform_indices = @transform_5, window_bounds = array<i64: 1, 128>}, {transform_indices = @transform_6, window_bounds = array<i64: 8, 128>}, {transform_indices = @transform_7, window_bounds = array<i64: 8, 128>}]} {
    %c0 = arith.constant 0 : index
    %c0_0 = arith.constant 0 : index
    %c0_1 = arith.constant 0 : index
    %0 = vector.load %arg1[%c0, %c0_0, %c0_1] : memref<8x8x5xf32, #tpu.memory_space<vmem>>, vector<8x8x5xf32>
    %1 = vector.shape_cast %0 : vector<8x8x5xf32> to vector<64x5xf32>
    %c0_2 = arith.constant 0 : index
    %c0_3 = arith.constant 0 : index
    %2 = vector.load %arg2[%c0_2, %c0_3] : memref<5x384xf32, #tpu.memory_space<vmem>>, vector<5x384xf32>
    %cst = arith.constant dense<0.000000e+00> : vector<64x384xf32>
    %3 = tpu.matmul %1, %2, %cst {dimension_numbers = #tpu.dot_dimension_numbers<[1], [0], [0], [1], [0, 0, 1, 1], [], []>} : vector<64x5xf32>, vector<5x384xf32>, vector<64x384xf32> -> vector<64x384xf32>
    %4 = vector.shape_cast %3 : vector<64x384xf32> to vector<8x8x384xf32>
    %c0_4 = arith.constant 0 : index
    %c0_5 = arith.constant 0 : index
    %c0_6 = arith.constant 0 : index
    %5 = vector.load %arg9[%c0_4, %c0_5, %c0_6] : memref<8x8x384xf32, #tpu.memory_space<vmem>>, vector<8x8x384xf32>
    tpu.vector_store %arg9[%c0_4, %c0_5, %c0_6], %4 {strides = array<i32>} : memref<8x8x384xf32, #tpu.memory_space<vmem>>, vector<8x8x384xf32>,
    %c0_7 = arith.constant 0 : index
    %c0_8 = arith.constant 0 : index
    %6 = vector.load %arg3[%c0_7, %c0_8] : memref<128x384xf32, #tpu.memory_space<vmem>>, vector<128x384xf32>
    %c0_9 = arith.constant 0 : index
    %c0_10 = arith.constant 0 : index
    %7 = vector.load %arg4[%c0_9, %c0_10] : memref<1x128xf32, #tpu.memory_space<vmem>>, vector<1x128xf32>
    %8 = vector.shape_cast %7 : vector<1x128xf32> to vector<1x128xf32>
    %9 = vector.broadcast %8 : vector<1x128xf32> to vector<8x128xf32>
    %cst_11 = arith.constant 0.000000e+00 : f32
    %10 = vector.broadcast %cst_11 : f32 to vector<8x128xf32>
    %c0_i32 = arith.constant 0 : i32
    %11 = arith.index_cast %c0_i32 : i32 to index
    %c0_12 = arith.constant 0 : index
    %c0_13 = arith.constant 0 : index
    %12 = vector.load %arg9[%11, %c0_12, %c0_13] : memref<8x8x384xf32, #tpu.memory_space<vmem>>, vector<1x8x384xf32>
    %13 = vector.shape_cast %12 : vector<1x8x384xf32> to vector<8x384xf32>
    %cst_14 = arith.constant dense<0.000000e+00> : vector<8x384xf32>
    %14 = tpu.matmul %10, %6, %cst_14 {dimension_numbers = #tpu.dot_dimension_numbers<[1], [0], [0], [1], [0, 0, 1, 1], [], []>} : vector<8x128xf32>, vector<128x384xf32>, vector<8x384xf32> -> vector<8x384xf32>
    %15 = vector.extract_strided_slice %13 {offsets = [0, 0], sizes = [8, 128], strides = [1, 1]} : vector<8x384xf32> to vector<8x128xf32>
    %16 = vector.extract_strided_slice %14 {offsets = [0, 0], sizes = [8, 128], strides = [1, 1]} : vector<8x384xf32> to vector<8x128xf32>
    %17 = arith.addf %15, %16 : vector<8x128xf32>
    %cst_15 = arith.constant 5.000000e-01 : f32
    %18 = vector.broadcast %cst_15 : f32 to vector<8x128xf32>
    %19 = arith.mulf %18, %17 : vector<8x128xf32>
    %20 = math.tanh %19 : vector<8x128xf32>
    %cst_16 = arith.constant 5.000000e-01 : f32
    %21 = vector.broadcast %cst_16 : f32 to vector<8x128xf32>
    %22 = arith.mulf %21, %20 : vector<8x128xf32>
    %cst_17 = arith.constant 5.000000e-01 : f32
    %23 = vector.broadcast %cst_17 : f32 to vector<8x128xf32>
    %24 = arith.addf %23, %22 : vector<8x128xf32>
    %25 = vector.extract_strided_slice %13 {offsets = [0, 128], sizes = [8, 128], strides = [1, 1]} : vector<8x384xf32> to vector<8x128xf32>
    %26 = vector.extract_strided_slice %14 {offsets = [0, 128], sizes = [8, 128], strides = [1, 1]} : vector<8x384xf32> to vector<8x128xf32>
    %27 = arith.addf %25, %26 : vector<8x128xf32>
    %cst_18 = arith.constant 5.000000e-01 : f32
    %28 = vector.broadcast %cst_18 : f32 to vector<8x128xf32>
    %29 = arith.mulf %28, %27 : vector<8x128xf32>
    %30 = math.tanh %29 : vector<8x128xf32>
    %cst_19 = arith.constant 5.000000e-01 : f32
    %31 = vector.broadcast %cst_19 : f32 to vector<8x128xf32>
    %32 = arith.mulf %31, %30 : vector<8x128xf32>
    %cst_20 = arith.constant 5.000000e-01 : f32
    %33 = vector.broadcast %cst_20 : f32 to vector<8x128xf32>
    %34 = arith.addf %33, %32 : vector<8x128xf32>
    %35 = vector.extract_strided_slice %13 {offsets = [0, 256], sizes = [8, 128], strides = [1, 1]} : vector<8x384xf32> to vector<8x128xf32>
    %36 = vector.extract_strided_slice %14 {offsets = [0, 256], sizes = [8, 128], strides = [1, 1]} : vector<8x384xf32> to vector<8x128xf32>
    %37 = arith.addf %36, %9 : vector<8x128xf32>
    %38 = arith.mulf %24, %37 : vector<8x128xf32>
    %39 = arith.addf %35, %38 : vector<8x128xf32>
    %40 = math.tanh %39 : vector<8x128xf32>
    %cst_21 = arith.constant 1.000000e+00 : f32
    %41 = vector.broadcast %cst_21 : f32 to vector<8x128xf32>
    %42 = arith.subf %41, %34 : vector<8x128xf32>
    %43 = arith.mulf %42, %40 : vector<8x128xf32>
    %44 = arith.mulf %34, %10 : vector<8x128xf32>
    %45 = arith.addf %43, %44 : vector<8x128xf32>
    %c1_i32 = arith.constant 1 : i32
    %46 = arith.index_cast %c1_i32 : i32 to index
    %c0_22 = arith.constant 0 : index
    %c0_23 = arith.constant 0 : index
    %47 = vector.load %arg9[%46, %c0_22, %c0_23] : memref<8x8x384xf32, #tpu.memory_space<vmem>>, vector<1x8x384xf32>
    %48 = vector.shape_cast %47 : vector<1x8x384xf32> to vector<8x384xf32>
    %cst_24 = arith.constant dense<0.000000e+00> : vector<8x384xf32>
    %49 = tpu.matmul %45, %6, %cst_24 {dimension_numbers = #tpu.dot_dimension_numbers<[1], [0], [0], [1], [0, 0, 1, 1], [], []>} : vector<8x128xf32>, vector<128x384xf32>, vector<8x384xf32> -> vector<8x384xf32>
    %50 = vector.extract_strided_slice %48 {offsets = [0, 0], sizes = [8, 128], strides = [1, 1]} : vector<8x384xf32> to vector<8x128xf32>
    %51 = vector.extract_strided_slice %49 {offsets = [0, 0], sizes = [8, 128], strides = [1, 1]} : vector<8x384xf32> to vector<8x128xf32>
    %52 = arith.addf %50, %51 : vector<8x128xf32>
    %cst_25 = arith.constant 5.000000e-01 : f32
    %53 = vector.broadcast %cst_25 : f32 to vector<8x128xf32>
    %54 = arith.mulf %53, %52 : vector<8x128xf32>
    %55 = math.tanh %54 : vector<8x128xf32>
    %cst_26 = arith.constant 5.000000e-01 : f32
    %56 = vector.broadcast %cst_26 : f32 to vector<8x128xf32>
    %57 = arith.mulf %56, %55 : vector<8x128xf32>
    %cst_27 = arith.constant 5.000000e-01 : f32
    %58 = vector.broadcast %cst_27 : f32 to vector<8x128xf32>
    %59 = arith.addf %58, %57 : vector<8x128xf32>
    %60 = vector.extract_strided_slice %48 {offsets = [0, 128], sizes = [8, 128], strides = [1, 1]} : vector<8x384xf32> to vector<8x128xf32>
    %61 = vector.extract_strided_slice %49 {offsets = [0, 128], sizes = [8, 128], strides = [1, 1]} : vector<8x384xf32> to vector<8x128xf32>
    %62 = arith.addf %60, %61 : vector<8x128xf32>
    %cst_28 = arith.constant 5.000000e-01 : f32
    %63 = vector.broadcast %cst_28 : f32 to vector<8x128xf32>
    %64 = arith.mulf %63, %62 : vector<8x128xf32>
    %65 = math.tanh %64 : vector<8x128xf32>
    %cst_29 = arith.constant 5.000000e-01 : f32
    %66 = vector.broadcast %cst_29 : f32 to vector<8x128xf32>
    %67 = arith.mulf %66, %65 : vector<8x128xf32>
    %cst_30 = arith.constant 5.000000e-01 : f32
    %68 = vector.broadcast %cst_30 : f32 to vector<8x128xf32>
    %69 = arith.addf %68, %67 : vector<8x128xf32>
    %70 = vector.extract_strided_slice %48 {offsets = [0, 256], sizes = [8, 128], strides = [1, 1]} : vector<8x384xf32> to vector<8x128xf32>
    %71 = vector.extract_strided_slice %49 {offsets = [0, 256], sizes = [8, 128], strides = [1, 1]} : vector<8x384xf32> to vector<8x128xf32>
    %72 = arith.addf %71, %9 : vector<8x128xf32>
    %73 = arith.mulf %59, %72 : vector<8x128xf32>
    %74 = arith.addf %70, %73 : vector<8x128xf32>
    %75 = math.tanh %74 : vector<8x128xf32>
    %cst_31 = arith.constant 1.000000e+00 : f32
    %76 = vector.broadcast %cst_31 : f32 to vector<8x128xf32>
    %77 = arith.subf %76, %69 : vector<8x128xf32>
    %78 = arith.mulf %77, %75 : vector<8x128xf32>
    %79 = arith.mulf %69, %45 : vector<8x128xf32>
    %80 = arith.addf %78, %79 : vector<8x128xf32>
    %c2_i32 = arith.constant 2 : i32
    %81 = arith.index_cast %c2_i32 : i32 to index
    %c0_32 = arith.constant 0 : index
    %c0_33 = arith.constant 0 : index
    %82 = vector.load %arg9[%81, %c0_32, %c0_33] : memref<8x8x384xf32, #tpu.memory_space<vmem>>, vector<1x8x384xf32>
    %83 = vector.shape_cast %82 : vector<1x8x384xf32> to vector<8x384xf32>
    %cst_34 = arith.constant dense<0.000000e+00> : vector<8x384xf32>
    %84 = tpu.matmul %80, %6, %cst_34 {dimension_numbers = #tpu.dot_dimension_numbers<[1], [0], [0], [1], [0, 0, 1, 1], [], []>} : vector<8x128xf32>, vector<128x384xf32>, vector<8x384xf32> -> vector<8x384xf32>
    %85 = vector.extract_strided_slice %83 {offsets = [0, 0], sizes = [8, 128], strides = [1, 1]} : vector<8x384xf32> to vector<8x128xf32>
    %86 = vector.extract_strided_slice %84 {offsets = [0, 0], sizes = [8, 128], strides = [1, 1]} : vector<8x384xf32> to vector<8x128xf32>
    %87 = arith.addf %85, %86 : vector<8x128xf32>
    %cst_35 = arith.constant 5.000000e-01 : f32
    %88 = vector.broadcast %cst_35 : f32 to vector<8x128xf32>
    %89 = arith.mulf %88, %87 : vector<8x128xf32>
    %90 = math.tanh %89 : vector<8x128xf32>
    %cst_36 = arith.constant 5.000000e-01 : f32
    %91 = vector.broadcast %cst_36 : f32 to vector<8x128xf32>
    %92 = arith.mulf %91, %90 : vector<8x128xf32>
    %cst_37 = arith.constant 5.000000e-01 : f32
    %93 = vector.broadcast %cst_37 : f32 to vector<8x128xf32>
    %94 = arith.addf %93, %92 : vector<8x128xf32>
    %95 = vector.extract_strided_slice %83 {offsets = [0, 128], sizes = [8, 128], strides = [1, 1]} : vector<8x384xf32> to vector<8x128xf32>
    %96 = vector.extract_strided_slice %84 {offsets = [0, 128], sizes = [8, 128], strides = [1, 1]} : vector<8x384xf32> to vector<8x128xf32>
    %97 = arith.addf %95, %96 : vector<8x128xf32>
    %cst_38 = arith.constant 5.000000e-01 : f32
    %98 = vector.broadcast %cst_38 : f32 to vector<8x128xf32>
    %99 = arith.mulf %98, %97 : vector<8x128xf32>
    %100 = math.tanh %99 : vector<8x128xf32>
    %cst_39 = arith.constant 5.000000e-01 : f32
    %101 = vector.broadcast %cst_39 : f32 to vector<8x128xf32>
    %102 = arith.mulf %101, %100 : vector<8x128xf32>
    %cst_40 = arith.constant 5.000000e-01 : f32
    %103 = vector.broadcast %cst_40 : f32 to vector<8x128xf32>
    %104 = arith.addf %103, %102 : vector<8x128xf32>
    %105 = vector.extract_strided_slice %83 {offsets = [0, 256], sizes = [8, 128], strides = [1, 1]} : vector<8x384xf32> to vector<8x128xf32>
    %106 = vector.extract_strided_slice %84 {offsets = [0, 256], sizes = [8, 128], strides = [1, 1]} : vector<8x384xf32> to vector<8x128xf32>
    %107 = arith.addf %106, %9 : vector<8x128xf32>
    %108 = arith.mulf %94, %107 : vector<8x128xf32>
    %109 = arith.addf %105, %108 : vector<8x128xf32>
    %110 = math.tanh %109 : vector<8x128xf32>
    %cst_41 = arith.constant 1.000000e+00 : f32
    %111 = vector.broadcast %cst_41 : f32 to vector<8x128xf32>
    %112 = arith.subf %111, %104 : vector<8x128xf32>
    %113 = arith.mulf %112, %110 : vector<8x128xf32>
    %114 = arith.mulf %104, %80 : vector<8x128xf32>
    %115 = arith.addf %113, %114 : vector<8x128xf32>
    %c3_i32 = arith.constant 3 : i32
    %116 = arith.index_cast %c3_i32 : i32 to index
    %c0_42 = arith.constant 0 : index
    %c0_43 = arith.constant 0 : index
    %117 = vector.load %arg9[%116, %c0_42, %c0_43] : memref<8x8x384xf32, #tpu.memory_space<vmem>>, vector<1x8x384xf32>
    %118 = vector.shape_cast %117 : vector<1x8x384xf32> to vector<8x384xf32>
    %cst_44 = arith.constant dense<0.000000e+00> : vector<8x384xf32>
    %119 = tpu.matmul %115, %6, %cst_44 {dimension_numbers = #tpu.dot_dimension_numbers<[1], [0], [0], [1], [0, 0, 1, 1], [], []>} : vector<8x128xf32>, vector<128x384xf32>, vector<8x384xf32> -> vector<8x384xf32>
    %120 = vector.extract_strided_slice %118 {offsets = [0, 0], sizes = [8, 128], strides = [1, 1]} : vector<8x384xf32> to vector<8x128xf32>
    %121 = vector.extract_strided_slice %119 {offsets = [0, 0], sizes = [8, 128], strides = [1, 1]} : vector<8x384xf32> to vector<8x128xf32>
    %122 = arith.addf %120, %121 : vector<8x128xf32>
    %cst_45 = arith.constant 5.000000e-01 : f32
    %123 = vector.broadcast %cst_45 : f32 to vector<8x128xf32>
    %124 = arith.mulf %123, %122 : vector<8x128xf32>
    %125 = math.tanh %124 : vector<8x128xf32>
    %cst_46 = arith.constant 5.000000e-01 : f32
    %126 = vector.broadcast %cst_46 : f32 to vector<8x128xf32>
    %127 = arith.mulf %126, %125 : vector<8x128xf32>
    %cst_47 = arith.constant 5.000000e-01 : f32
    %128 = vector.broadcast %cst_47 : f32 to vector<8x128xf32>
    %129 = arith.addf %128, %127 : vector<8x128xf32>
    %130 = vector.extract_strided_slice %118 {offsets = [0, 128], sizes = [8, 128], strides = [1, 1]} : vector<8x384xf32> to vector<8x128xf32>
    %131 = vector.extract_strided_slice %119 {offsets = [0, 128], sizes = [8, 128], strides = [1, 1]} : vector<8x384xf32> to vector<8x128xf32>
    %132 = arith.addf %130, %131 : vector<8x128xf32>
    %cst_48 = arith.constant 5.000000e-01 : f32
    %133 = vector.broadcast %cst_48 : f32 to vector<8x128xf32>
    %134 = arith.mulf %133, %132 : vector<8x128xf32>
    %135 = math.tanh %134 : vector<8x128xf32>
    %cst_49 = arith.constant 5.000000e-01 : f32
    %136 = vector.broadcast %cst_49 : f32 to vector<8x128xf32>
    %137 = arith.mulf %136, %135 : vector<8x128xf32>
    %cst_50 = arith.constant 5.000000e-01 : f32
    %138 = vector.broadcast %cst_50 : f32 to vector<8x128xf32>
    %139 = arith.addf %138, %137 : vector<8x128xf32>
    %140 = vector.extract_strided_slice %118 {offsets = [0, 256], sizes = [8, 128], strides = [1, 1]} : vector<8x384xf32> to vector<8x128xf32>
    %141 = vector.extract_strided_slice %119 {offsets = [0, 256], sizes = [8, 128], strides = [1, 1]} : vector<8x384xf32> to vector<8x128xf32>
    %142 = arith.addf %141, %9 : vector<8x128xf32>
    %143 = arith.mulf %129, %142 : vector<8x128xf32>
    %144 = arith.addf %140, %143 : vector<8x128xf32>
    %145 = math.tanh %144 : vector<8x128xf32>
    %cst_51 = arith.constant 1.000000e+00 : f32
    %146 = vector.broadcast %cst_51 : f32 to vector<8x128xf32>
    %147 = arith.subf %146, %139 : vector<8x128xf32>
    %148 = arith.mulf %147, %145 : vector<8x128xf32>
    %149 = arith.mulf %139, %115 : vector<8x128xf32>
    %150 = arith.addf %148, %149 : vector<8x128xf32>
    %c4_i32 = arith.constant 4 : i32
    %151 = arith.index_cast %c4_i32 : i32 to index
    %c0_52 = arith.constant 0 : index
    %c0_53 = arith.constant 0 : index
    %152 = vector.load %arg9[%151, %c0_52, %c0_53] : memref<8x8x384xf32, #tpu.memory_space<vmem>>, vector<1x8x384xf32>
    %153 = vector.shape_cast %152 : vector<1x8x384xf32> to vector<8x384xf32>
    %cst_54 = arith.constant dense<0.000000e+00> : vector<8x384xf32>
    %154 = tpu.matmul %150, %6, %cst_54 {dimension_numbers = #tpu.dot_dimension_numbers<[1], [0], [0], [1], [0, 0, 1, 1], [], []>} : vector<8x128xf32>, vector<128x384xf32>, vector<8x384xf32> -> vector<8x384xf32>
    %155 = vector.extract_strided_slice %153 {offsets = [0, 0], sizes = [8, 128], strides = [1, 1]} : vector<8x384xf32> to vector<8x128xf32>
    %156 = vector.extract_strided_slice %154 {offsets = [0, 0], sizes = [8, 128], strides = [1, 1]} : vector<8x384xf32> to vector<8x128xf32>
    %157 = arith.addf %155, %156 : vector<8x128xf32>
    %cst_55 = arith.constant 5.000000e-01 : f32
    %158 = vector.broadcast %cst_55 : f32 to vector<8x128xf32>
    %159 = arith.mulf %158, %157 : vector<8x128xf32>
    %160 = math.tanh %159 : vector<8x128xf32>
    %cst_56 = arith.constant 5.000000e-01 : f32
    %161 = vector.broadcast %cst_56 : f32 to vector<8x128xf32>
    %162 = arith.mulf %161, %160 : vector<8x128xf32>
    %cst_57 = arith.constant 5.000000e-01 : f32
    %163 = vector.broadcast %cst_57 : f32 to vector<8x128xf32>
    %164 = arith.addf %163, %162 : vector<8x128xf32>
    %165 = vector.extract_strided_slice %153 {offsets = [0, 128], sizes = [8, 128], strides = [1, 1]} : vector<8x384xf32> to vector<8x128xf32>
    %166 = vector.extract_strided_slice %154 {offsets = [0, 128], sizes = [8, 128], strides = [1, 1]} : vector<8x384xf32> to vector<8x128xf32>
    %167 = arith.addf %165, %166 : vector<8x128xf32>
    %cst_58 = arith.constant 5.000000e-01 : f32
    %168 = vector.broadcast %cst_58 : f32 to vector<8x128xf32>
    %169 = arith.mulf %168, %167 : vector<8x128xf32>
    %170 = math.tanh %169 : vector<8x128xf32>
    %cst_59 = arith.constant 5.000000e-01 : f32
    %171 = vector.broadcast %cst_59 : f32 to vector<8x128xf32>
    %172 = arith.mulf %171, %170 : vector<8x128xf32>
    %cst_60 = arith.constant 5.000000e-01 : f32
    %173 = vector.broadcast %cst_60 : f32 to vector<8x128xf32>
    %174 = arith.addf %173, %172 : vector<8x128xf32>
    %175 = vector.extract_strided_slice %153 {offsets = [0, 256], sizes = [8, 128], strides = [1, 1]} : vector<8x384xf32> to vector<8x128xf32>
    %176 = vector.extract_strided_slice %154 {offsets = [0, 256], sizes = [8, 128], strides = [1, 1]} : vector<8x384xf32> to vector<8x128xf32>
    %177 = arith.addf %176, %9 : vector<8x128xf32>
    %178 = arith.mulf %164, %177 : vector<8x128xf32>
    %179 = arith.addf %175, %178 : vector<8x128xf32>
    %180 = math.tanh %179 : vector<8x128xf32>
    %cst_61 = arith.constant 1.000000e+00 : f32
    %181 = vector.broadcast %cst_61 : f32 to vector<8x128xf32>
    %182 = arith.subf %181, %174 : vector<8x128xf32>
    %183 = arith.mulf %182, %180 : vector<8x128xf32>
    %184 = arith.mulf %174, %150 : vector<8x128xf32>
    %185 = arith.addf %183, %184 : vector<8x128xf32>
    %c5_i32 = arith.constant 5 : i32
    %186 = arith.index_cast %c5_i32 : i32 to index
    %c0_62 = arith.constant 0 : index
    %c0_63 = arith.constant 0 : index
    %187 = vector.load %arg9[%186, %c0_62, %c0_63] : memref<8x8x384xf32, #tpu.memory_space<vmem>>, vector<1x8x384xf32>
    %188 = vector.shape_cast %187 : vector<1x8x384xf32> to vector<8x384xf32>
    %cst_64 = arith.constant dense<0.000000e+00> : vector<8x384xf32>
    %189 = tpu.matmul %185, %6, %cst_64 {dimension_numbers = #tpu.dot_dimension_numbers<[1], [0], [0], [1], [0, 0, 1, 1], [], []>} : vector<8x128xf32>, vector<128x384xf32>, vector<8x384xf32> -> vector<8x384xf32>
    %190 = vector.extract_strided_slice %188 {offsets = [0, 0], sizes = [8, 128], strides = [1, 1]} : vector<8x384xf32> to vector<8x128xf32>
    %191 = vector.extract_strided_slice %189 {offsets = [0, 0], sizes = [8, 128], strides = [1, 1]} : vector<8x384xf32> to vector<8x128xf32>
    %192 = arith.addf %190, %191 : vector<8x128xf32>
    %cst_65 = arith.constant 5.000000e-01 : f32
    %193 = vector.broadcast %cst_65 : f32 to vector<8x128xf32>
    %194 = arith.mulf %193, %192 : vector<8x128xf32>
    %195 = math.tanh %194 : vector<8x128xf32>
    %cst_66 = arith.constant 5.000000e-01 : f32
    %196 = vector.broadcast %cst_66 : f32 to vector<8x128xf32>
    %197 = arith.mulf %196, %195 : vector<8x128xf32>
    %cst_67 = arith.constant 5.000000e-01 : f32
    %198 = vector.broadcast %cst_67 : f32 to vector<8x128xf32>
    %199 = arith.addf %198, %197 : vector<8x128xf32>
    %200 = vector.extract_strided_slice %188 {offsets = [0, 128], sizes = [8, 128], strides = [1, 1]} : vector<8x384xf32> to vector<8x128xf32>
    %201 = vector.extract_strided_slice %189 {offsets = [0, 128], sizes = [8, 128], strides = [1, 1]} : vector<8x384xf32> to vector<8x128xf32>
    %202 = arith.addf %200, %201 : vector<8x128xf32>
    %cst_68 = arith.constant 5.000000e-01 : f32
    %203 = vector.broadcast %cst_68 : f32 to vector<8x128xf32>
    %204 = arith.mulf %203, %202 : vector<8x128xf32>
    %205 = math.tanh %204 : vector<8x128xf32>
    %cst_69 = arith.constant 5.000000e-01 : f32
    %206 = vector.broadcast %cst_69 : f32 to vector<8x128xf32>
    %207 = arith.mulf %206, %205 : vector<8x128xf32>
    %cst_70 = arith.constant 5.000000e-01 : f32
    %208 = vector.broadcast %cst_70 : f32 to vector<8x128xf32>
    %209 = arith.addf %208, %207 : vector<8x128xf32>
    %210 = vector.extract_strided_slice %188 {offsets = [0, 256], sizes = [8, 128], strides = [1, 1]} : vector<8x384xf32> to vector<8x128xf32>
    %211 = vector.extract_strided_slice %189 {offsets = [0, 256], sizes = [8, 128], strides = [1, 1]} : vector<8x384xf32> to vector<8x128xf32>
    %212 = arith.addf %211, %9 : vector<8x128xf32>
    %213 = arith.mulf %199, %212 : vector<8x128xf32>
    %214 = arith.addf %210, %213 : vector<8x128xf32>
    %215 = math.tanh %214 : vector<8x128xf32>
    %cst_71 = arith.constant 1.000000e+00 : f32
    %216 = vector.broadcast %cst_71 : f32 to vector<8x128xf32>
    %217 = arith.subf %216, %209 : vector<8x128xf32>
    %218 = arith.mulf %217, %215 : vector<8x128xf32>
    %219 = arith.mulf %209, %185 : vector<8x128xf32>
    %220 = arith.addf %218, %219 : vector<8x128xf32>
    %c6_i32 = arith.constant 6 : i32
    %221 = arith.index_cast %c6_i32 : i32 to index
    %c0_72 = arith.constant 0 : index
    %c0_73 = arith.constant 0 : index
    %222 = vector.load %arg9[%221, %c0_72, %c0_73] : memref<8x8x384xf32, #tpu.memory_space<vmem>>, vector<1x8x384xf32>
    %223 = vector.shape_cast %222 : vector<1x8x384xf32> to vector<8x384xf32>
    %cst_74 = arith.constant dense<0.000000e+00> : vector<8x384xf32>
    %224 = tpu.matmul %220, %6, %cst_74 {dimension_numbers = #tpu.dot_dimension_numbers<[1], [0], [0], [1], [0, 0, 1, 1], [], []>} : vector<8x128xf32>, vector<128x384xf32>, vector<8x384xf32> -> vector<8x384xf32>
    %225 = vector.extract_strided_slice %223 {offsets = [0, 0], sizes = [8, 128], strides = [1, 1]} : vector<8x384xf32> to vector<8x128xf32>
    %226 = vector.extract_strided_slice %224 {offsets = [0, 0], sizes = [8, 128], strides = [1, 1]} : vector<8x384xf32> to vector<8x128xf32>
    %227 = arith.addf %225, %226 : vector<8x128xf32>
    %cst_75 = arith.constant 5.000000e-01 : f32
    %228 = vector.broadcast %cst_75 : f32 to vector<8x128xf32>
    %229 = arith.mulf %228, %227 : vector<8x128xf32>
    %230 = math.tanh %229 : vector<8x128xf32>
    %cst_76 = arith.constant 5.000000e-01 : f32
    %231 = vector.broadcast %cst_76 : f32 to vector<8x128xf32>
    %232 = arith.mulf %231, %230 : vector<8x128xf32>
    %cst_77 = arith.constant 5.000000e-01 : f32
    %233 = vector.broadcast %cst_77 : f32 to vector<8x128xf32>
    %234 = arith.addf %233, %232 : vector<8x128xf32>
    %235 = vector.extract_strided_slice %223 {offsets = [0, 128], sizes = [8, 128], strides = [1, 1]} : vector<8x384xf32> to vector<8x128xf32>
    %236 = vector.extract_strided_slice %224 {offsets = [0, 128], sizes = [8, 128], strides = [1, 1]} : vector<8x384xf32> to vector<8x128xf32>
    %237 = arith.addf %235, %236 : vector<8x128xf32>
    %cst_78 = arith.constant 5.000000e-01 : f32
    %238 = vector.broadcast %cst_78 : f32 to vector<8x128xf32>
    %239 = arith.mulf %238, %237 : vector<8x128xf32>
    %240 = math.tanh %239 : vector<8x128xf32>
    %cst_79 = arith.constant 5.000000e-01 : f32
    %241 = vector.broadcast %cst_79 : f32 to vector<8x128xf32>
    %242 = arith.mulf %241, %240 : vector<8x128xf32>
    %cst_80 = arith.constant 5.000000e-01 : f32
    %243 = vector.broadcast %cst_80 : f32 to vector<8x128xf32>
    %244 = arith.addf %243, %242 : vector<8x128xf32>
    %245 = vector.extract_strided_slice %223 {offsets = [0, 256], sizes = [8, 128], strides = [1, 1]} : vector<8x384xf32> to vector<8x128xf32>
    %246 = vector.extract_strided_slice %224 {offsets = [0, 256], sizes = [8, 128], strides = [1, 1]} : vector<8x384xf32> to vector<8x128xf32>
    %247 = arith.addf %246, %9 : vector<8x128xf32>
    %248 = arith.mulf %234, %247 : vector<8x128xf32>
    %249 = arith.addf %245, %248 : vector<8x128xf32>
    %250 = math.tanh %249 : vector<8x128xf32>
    %cst_81 = arith.constant 1.000000e+00 : f32
    %251 = vector.broadcast %cst_81 : f32 to vector<8x128xf32>
    %252 = arith.subf %251, %244 : vector<8x128xf32>
    %253 = arith.mulf %252, %250 : vector<8x128xf32>
    %254 = arith.mulf %244, %220 : vector<8x128xf32>
    %255 = arith.addf %253, %254 : vector<8x128xf32>
    %c7_i32 = arith.constant 7 : i32
    %256 = arith.index_cast %c7_i32 : i32 to index
    %c0_82 = arith.constant 0 : index
    %c0_83 = arith.constant 0 : index
    %257 = vector.load %arg9[%256, %c0_82, %c0_83] : memref<8x8x384xf32, #tpu.memory_space<vmem>>, vector<1x8x384xf32>
    %258 = vector.shape_cast %257 : vector<1x8x384xf32> to vector<8x384xf32>
    %cst_84 = arith.constant dense<0.000000e+00> : vector<8x384xf32>
    %259 = tpu.matmul %255, %6, %cst_84 {dimension_numbers = #tpu.dot_dimension_numbers<[1], [0], [0], [1], [0, 0, 1, 1], [], []>} : vector<8x128xf32>, vector<128x384xf32>, vector<8x384xf32> -> vector<8x384xf32>
    %260 = vector.extract_strided_slice %258 {offsets = [0, 0], sizes = [8, 128], strides = [1, 1]} : vector<8x384xf32> to vector<8x128xf32>
    %261 = vector.extract_strided_slice %259 {offsets = [0, 0], sizes = [8, 128], strides = [1, 1]} : vector<8x384xf32> to vector<8x128xf32>
    %262 = arith.addf %260, %261 : vector<8x128xf32>
    %cst_85 = arith.constant 5.000000e-01 : f32
    %263 = vector.broadcast %cst_85 : f32 to vector<8x128xf32>
    %264 = arith.mulf %263, %262 : vector<8x128xf32>
    %265 = math.tanh %264 : vector<8x128xf32>
    %cst_86 = arith.constant 5.000000e-01 : f32
    %266 = vector.broadcast %cst_86 : f32 to vector<8x128xf32>
    %267 = arith.mulf %266, %265 : vector<8x128xf32>
    %cst_87 = arith.constant 5.000000e-01 : f32
    %268 = vector.broadcast %cst_87 : f32 to vector<8x128xf32>
    %269 = arith.addf %268, %267 : vector<8x128xf32>
    %270 = vector.extract_strided_slice %258 {offsets = [0, 128], sizes = [8, 128], strides = [1, 1]} : vector<8x384xf32> to vector<8x128xf32>
    %271 = vector.extract_strided_slice %259 {offsets = [0, 128], sizes = [8, 128], strides = [1, 1]} : vector<8x384xf32> to vector<8x128xf32>
    %272 = arith.addf %270, %271 : vector<8x128xf32>
    %cst_88 = arith.constant 5.000000e-01 : f32
    %273 = vector.broadcast %cst_88 : f32 to vector<8x128xf32>
    %274 = arith.mulf %273, %272 : vector<8x128xf32>
    %275 = math.tanh %274 : vector<8x128xf32>
    %cst_89 = arith.constant 5.000000e-01 : f32
    %276 = vector.broadcast %cst_89 : f32 to vector<8x128xf32>
    %277 = arith.mulf %276, %275 : vector<8x128xf32>
    %cst_90 = arith.constant 5.000000e-01 : f32
    %278 = vector.broadcast %cst_90 : f32 to vector<8x128xf32>
    %279 = arith.addf %278, %277 : vector<8x128xf32>
    %280 = vector.extract_strided_slice %258 {offsets = [0, 256], sizes = [8, 128], strides = [1, 1]} : vector<8x384xf32> to vector<8x128xf32>
    %281 = vector.extract_strided_slice %259 {offsets = [0, 256], sizes = [8, 128], strides = [1, 1]} : vector<8x384xf32> to vector<8x128xf32>
    %282 = arith.addf %281, %9 : vector<8x128xf32>
    %283 = arith.mulf %269, %282 : vector<8x128xf32>
    %284 = arith.addf %280, %283 : vector<8x128xf32>
    %285 = math.tanh %284 : vector<8x128xf32>
    %cst_91 = arith.constant 1.000000e+00 : f32
    %286 = vector.broadcast %cst_91 : f32 to vector<8x128xf32>
    %287 = arith.subf %286, %279 : vector<8x128xf32>
    %288 = arith.mulf %287, %285 : vector<8x128xf32>
    %289 = arith.mulf %279, %255 : vector<8x128xf32>
    %290 = arith.addf %288, %289 : vector<8x128xf32>
    %c8_i32 = arith.constant 8 : i32
    %c0_92 = arith.constant 0 : index
    %c0_93 = arith.constant 0 : index
    %291 = vector.load %arg5[%c0_92, %c0_93] : memref<128x128xf32, #tpu.memory_space<vmem>>, vector<128x128xf32>
    %cst_94 = arith.constant dense<0.000000e+00> : vector<8x128xf32>
    %292 = tpu.matmul %290, %291, %cst_94 {dimension_numbers = #tpu.dot_dimension_numbers<[1], [0], [0], [1], [0, 0, 1, 1], [], []>} : vector<8x128xf32>, vector<128x128xf32>, vector<8x128xf32> -> vector<8x128xf32>
    %c0_95 = arith.constant 0 : index
    %c0_96 = arith.constant 0 : index
    %293 = vector.load %arg6[%c0_95, %c0_96] : memref<1x128xf32, #tpu.memory_space<vmem>>, vector<1x128xf32>
    %294 = vector.broadcast %293 : vector<1x128xf32> to vector<8x128xf32>
    %295 = arith.addf %292, %294 : vector<8x128xf32>
    %c0_97 = arith.constant 0 : index
    %c0_98 = arith.constant 0 : index
    %296 = vector.load %arg7[%c0_97, %c0_98] : memref<8x128xf32, #tpu.memory_space<vmem>>, vector<8x128xf32>
    tpu.vector_store %arg7[%c0_97, %c0_98], %295 {strides = array<i32>} : memref<8x128xf32, #tpu.memory_space<vmem>>, vector<8x128xf32>,
    %297 = arith.negf %295 : vector<8x128xf32>
    %298 = math.exp %297 : vector<8x128xf32>
    %cst_99 = arith.constant 1.000000e+00 : f32
    %299 = vector.broadcast %cst_99 : f32 to vector<8x128xf32>
    %300 = arith.addf %299, %298 : vector<8x128xf32>
    %301 = arith.divf %299, %300 : vector<8x128xf32>
    %c0_100 = arith.constant 0 : index
    %c0_101 = arith.constant 0 : index
    %302 = vector.load %arg8[%c0_100, %c0_101] : memref<8x128xf32, #tpu.memory_space<vmem>>, vector<8x128xf32>
    tpu.vector_store %arg8[%c0_100, %c0_101], %301 {strides = array<i32>} : memref<8x128xf32, #tpu.memory_space<vmem>>, vector<8x128xf32>,
    return
  }
  func.func @transform_0(%arg0: i32) -> (i32, i32, i32) {
    %c0_i32 = arith.constant 0 : i32
    %c0_i32_0 = arith.constant 0 : i32
    %c0_i32_1 = arith.constant 0 : i32
    return %c0_i32, %arg0, %c0_i32_0 : i32, i32, i32
  }
  func.func @transform_1(%arg0: i32) -> (i32, i32) {
    %c0_i32 = arith.constant 0 : i32
    %c0_i32_0 = arith.constant 0 : i32
    %c0_i32_1 = arith.constant 0 : i32
    return %c0_i32, %c0_i32_0 : i32, i32
  }
  func.func @transform_2(%arg0: i32) -> (i32, i32) {
    %c0_i32 = arith.constant 0 : i32
    %c0_i32_0 = arith.constant 0 : i32
    %c0_i32_1 = arith.constant 0 : i32
    return %c0_i32, %c0_i32_0 : i32, i32
  }
  func.func @transform_3(%arg0: i32) -> (i32, i32) {
    %c0_i32 = arith.constant 0 : i32
    %c0_i32_0 = arith.constant 0 : i32
    %c0_i32_1 = arith.constant 0 : i32
    return %c0_i32, %c0_i32_0 : i32, i32
  }
  func.func @transform_4(%arg0: i32) -> (i32, i32) {
    %c0_i32 = arith.constant 0 : i32
    %c0_i32_0 = arith.constant 0 : i32
    %c0_i32_1 = arith.constant 0 : i32
    return %c0_i32, %c0_i32_0 : i32, i32
  }
  func.func @transform_5(%arg0: i32) -> (i32, i32) {
    %c0_i32 = arith.constant 0 : i32
    %c0_i32_0 = arith.constant 0 : i32
    %c0_i32_1 = arith.constant 0 : i32
    return %c0_i32, %c0_i32_0 : i32, i32
  }
  func.func @transform_6(%arg0: i32) -> (i32, i32) {
    %c0_i32 = arith.constant 0 : i32
    %c0_i32_0 = arith.constant 0 : i32
    return %arg0, %c0_i32 : i32, i32
  }
  func.func @transform_7(%arg0: i32) -> (i32, i32) {
    %c0_i32 = arith.constant 0 : i32
    %c0_i32_0 = arith.constant 0 : i32
    return %arg0, %c0_i32 : i32, i32
  }
}

</mosaic_0001>

<llo_original>
// kernel: discriminator_forward.1
$region0: #{discriminator_forward.1}
  #allocation0 [shape = 'u32[]', space=smem, size = 0x4, offset = 0x4, fixed_abs, tag = 'smem constant byte address 0x4 - core index']
  #allocation1 [shape = 'u32[72,128]{1,0:T(1,128)}', space=vmem, size = 0x9000, scoped, tag = 'internal scratch']
  #allocation2 [shape = 'f32[8,8,384]{2,1,0:T(8,128)}', space=vmem, size = 0x18000, scoped, tag = 'scratch operand']
  %s0 = inlined_call_operand.vmem [shape: f32[8,8,5], index: 0, kind: input, shape index: {}]
  %s1 = inlined_call_operand.vmem [shape: f32[5,384], index: 1, kind: input, shape index: {}]
  %s2 = inlined_call_operand.vmem [shape: f32[128,384], index: 2, kind: input, shape index: {}]
  %s3 = inlined_call_operand.vmem [shape: f32[1,128], index: 3, kind: input, shape index: {}]
  %s4 = inlined_call_operand.vmem [shape: f32[128,128], index: 4, kind: input, shape index: {}]
  %s5 = inlined_call_operand.vmem [shape: f32[1,128], index: 5, kind: input, shape index: {}]
  %s6 = inlined_call_operand.vmem [shape: f32[8,128], index: 6, kind: output, shape index: {0}]
  %s7 = inlined_call_operand.vmem [shape: f32[8,128], index: 7, kind: output, shape index: {1}]
  %8 = xla_tuple %s6, %s7
  %s9 = sld [smem:[#allocation0]]
  $region42: #{discriminator_forward.1} parent=0
    _
  %s11 = ssub.s32 1, %s9
  %s12 = scalar_select 0, %s11, %s9
  // Predicated region
  $region2: #{discriminator_forward.1} parent=0 // pred_check
    _
  $region3: #{discriminator_forward.1} parent=0 // pred_check_branch
    %14 = sbr.rel (0) target = $region5
  $region4: #{discriminator_forward.1} parent=0 // pred_region
    _
  $region5: #{discriminator_forward.1} parent=0 // pred_fallthru
    _
  // Predicated region
  $region6: #{discriminator_forward.1} parent=0 // pred_check
    _
  $region7: #{discriminator_forward.1} parent=0 // pred_check_branch
    %16 = sbr.rel (0) target = $region9
  $region8: #{discriminator_forward.1} parent=0 // pred_region
    _
  $region9: #{discriminator_forward.1} parent=0 // pred_fallthru
    _
  // Predicated region
  $region10: #{discriminator_forward.1} parent=0 // pred_check
    _
  $region11: #{discriminator_forward.1} parent=0 // pred_check_branch
    %18 = sbr.rel (0) target = $region13
  $region12: #{discriminator_forward.1} parent=0 // pred_region
    _
  $region13: #{discriminator_forward.1} parent=0 // pred_fallthru
    _
  // Predicated region
  $region14: #{discriminator_forward.1} parent=0 // pred_check
    _
  $region15: #{discriminator_forward.1} parent=0 // pred_check_branch
    %20 = sbr.rel (0) target = $region17
  $region16: #{discriminator_forward.1} parent=0 // pred_region
    _
  $region17: #{discriminator_forward.1} parent=0 // pred_fallthru
    _
  // Predicated region
  $region18: #{discriminator_forward.1} parent=0 // pred_check
    _
  $region19: #{discriminator_forward.1} parent=0 // pred_check_branch
    %22 = sbr.rel (0) target = $region21
  $region20: #{discriminator_forward.1} parent=0 // pred_region
    _
  $region21: #{discriminator_forward.1} parent=0 // pred_fallthru
    _
  // Predicated region
  $region22: #{discriminator_forward.1} parent=0 // pred_check
    _
  $region23: #{discriminator_forward.1} parent=0 // pred_check_branch
    %24 = sbr.rel (0) target = $region25
  $region24: #{discriminator_forward.1} parent=0 // pred_region
    _
  $region25: #{discriminator_forward.1} parent=0 // pred_fallthru
    _
  %v25 = vld [vmem:[%s0] sm:$0xff]
  %v26 = vld [vmem:[%s0 + $0x8] sm:$0xff]
  %v27 = vld [vmem:[%s0 + $0x10] sm:$0xff]
  %v28 = vld [vmem:[%s0 + $0x18] sm:$0xff]
  %v29 = vld [vmem:[%s0 + $0x20] sm:$0xff]
  %v30 = vld [vmem:[%s0 + $0x28] sm:$0xff]
  %v31 = vld [vmem:[%s0 + $0x30] sm:$0xff]
  %v32 = vld [vmem:[%s0 + $0x38] sm:$0xff]
  %v33 = vld [vmem:[%s1] sm:$0x1f]
  %v34 = vld [vmem:[%s1 + $0x8] sm:$0x1f]
  %v35 = vld [vmem:[%s1 + $0x10] sm:$0x1f]
  %vm36 = vcmask 39936
  %v38 = vsel %vm36, %v25, 0
  %v41 = vsel %vm36, %v26, 0
  %v44 = vsel %vm36, %v27, 0
  %v47 = vsel %vm36, %v28, 0
  %v50 = vsel %vm36, %v29, 0
  %v53 = vsel %vm36, %v30, 0
  %v56 = vsel %vm36, %v31, 0
  %v59 = vsel %vm36, %v32, 0
  %vm61 = vcmask 1044480
  %v63 = vsel %vm61, %v33, 0
  %v66 = vsel %vm61, %v34, 0
  %v69 = vsel %vm61, %v35, 0
  %71 = vmatpush.msra.mxu0 0.0
  %72 = vmatpush.msra.mxu0 0.0
  %73 = vmatpush.msra.mxu0 0.0
  %74 = vmatpush.msra.mxu0 0.0
  %75 = vmatpush.msra.mxu0 0.0
  %76 = vmatpush.msra.mxu0 0.0
  %77 = vmatpush.msra.mxu0 0.0
  %78 = vmatpush.msra.mxu0 0.0
  %79 = vmatpush.msra.mxu0 0.0
  %80 = vmatpush.msra.mxu0 0.0
  %81 = vmatpush.msra.mxu0 0.0
  %82 = vmatpush.msra.mxu0 0.0
  %83 = vmatpush.msra.mxu0 0.0
  %84 = vmatpush.msra.mxu0 0.0
  %85 = vmatpush.msra.mxu0 0.0
  %86 = vmatpush.msra.mxu0 %v63
  %87 = vmatmul.f32.gmra.mxu0 %v38
  %v88 = vpop.f32.mrf.mxu0
  %v89 = vadd.f32 0.0, %v88
  %90 = vmatmul.f32.gmra.mxu0 %v41
  %v91 = vpop.f32.mrf.mxu0
  %v92 = vadd.f32 0.0, %v91
  %93 = vmatmul.f32.gmra.mxu0 %v44
  %v94 = vpop.f32.mrf.mxu0
  %v95 = vadd.f32 0.0, %v94
  %96 = vmatmul.f32.gmra.mxu0 %v47
  %v97 = vpop.f32.mrf.mxu0
  %v98 = vadd.f32 0.0, %v97
  %99 = vmatmul.f32.gmra.mxu0 %v50
  %v100 = vpop.f32.mrf.mxu0
  %v101 = vadd.f32 0.0, %v100
  %102 = vmatmul.f32.gmra.mxu0 %v53
  %v103 = vpop.f32.mrf.mxu0
  %v104 = vadd.f32 0.0, %v103
  %105 = vmatmul.f32.gmra.mxu0 %v56
  %v106 = vpop.f32.mrf.mxu0
  %v107 = vadd.f32 0.0, %v106
  %108 = vmatmul.f32.gmra.mxu0 %v59
  %v109 = vpop.f32.mrf.mxu0
  %v110 = vadd.f32 0.0, %v109
  %111 = vdwg.mxu0
  %112 = vmatpush.msra.mxu0 0.0
  %113 = vmatpush.msra.mxu0 0.0
  %114 = vmatpush.msra.mxu0 0.0
  %115 = vmatpush.msra.mxu0 0.0
  %116 = vmatpush.msra.mxu0 0.0
  %117 = vmatpush.msra.mxu0 0.0
  %118 = vmatpush.msra.mxu0 0.0
  %119 = vmatpush.msra.mxu0 0.0
  %120 = vmatpush.msra.mxu0 0.0
  %121 = vmatpush.msra.mxu0 0.0
  %122 = vmatpush.msra.mxu0 0.0
  %123 = vmatpush.msra.mxu0 0.0
  %124 = vmatpush.msra.mxu0 0.0
  %125 = vmatpush.msra.mxu0 0.0
  %126 = vmatpush.msra.mxu0 0.0
  %127 = vmatpush.msra.mxu0 %v66
  %128 = vmatmul.f32.gmra.mxu0 %v38
  %v129 = vpop.f32.mrf.mxu0
  %v130 = vadd.f32 0.0, %v129
  %131 = vmatmul.f32.gmra.mxu0 %v41
  %v132 = vpop.f32.mrf.mxu0
  %v133 = vadd.f32 0.0, %v132
  %134 = vmatmul.f32.gmra.mxu0 %v44
  %v135 = vpop.f32.mrf.mxu0
  %v136 = vadd.f32 0.0, %v135
  %137 = vmatmul.f32.gmra.mxu0 %v47
  %v138 = vpop.f32.mrf.mxu0
  %v139 = vadd.f32 0.0, %v138
  %140 = vmatmul.f32.gmra.mxu0 %v50
  %v141 = vpop.f32.mrf.mxu0
  %v142 = vadd.f32 0.0, %v141
  %143 = vmatmul.f32.gmra.mxu0 %v53
  %v144 = vpop.f32.mrf.mxu0
  %v145 = vadd.f32 0.0, %v144
  %146 = vmatmul.f32.gmra.mxu0 %v56
  %v147 = vpop.f32.mrf.mxu0
  %v148 = vadd.f32 0.0, %v147
  %149 = vmatmul.f32.gmra.mxu0 %v59
  %v150 = vpop.f32.mrf.mxu0
  %v151 = vadd.f32 0.0, %v150
  %152 = vdwg.mxu0
  %153 = vmatpush.msra.mxu0 0.0
  %154 = vmatpush.msra.mxu0 0.0
  %155 = vmatpush.msra.mxu0 0.0
  %156 = vmatpush.msra.mxu0 0.0
  %157 = vmatpush.msra.mxu0 0.0
  %158 = vmatpush.msra.mxu0 0.0
  %159 = vmatpush.msra.mxu0 0.0
  %160 = vmatpush.msra.mxu0 0.0
  %161 = vmatpush.msra.mxu0 0.0
  %162 = vmatpush.msra.mxu0 0.0
  %163 = vmatpush.msra.mxu0 0.0
  %164 = vmatpush.msra.mxu0 0.0
  %165 = vmatpush.msra.mxu0 0.0
  %166 = vmatpush.msra.mxu0 0.0
  %167 = vmatpush.msra.mxu0 0.0
  %168 = vmatpush.msra.mxu0 %v69
  %169 = vmatmul.f32.gmra.mxu0 %v38
  %v170 = vpop.f32.mrf.mxu0
  %v171 = vadd.f32 0.0, %v170
  %172 = vmatmul.f32.gmra.mxu0 %v41
  %v173 = vpop.f32.mrf.mxu0
  %v174 = vadd.f32 0.0, %v173
  %175 = vmatmul.f32.gmra.mxu0 %v44
  %v176 = vpop.f32.mrf.mxu0
  %v177 = vadd.f32 0.0, %v176
  %178 = vmatmul.f32.gmra.mxu0 %v47
  %v179 = vpop.f32.mrf.mxu0
  %v180 = vadd.f32 0.0, %v179
  %181 = vmatmul.f32.gmra.mxu0 %v50
  %v182 = vpop.f32.mrf.mxu0
  %v183 = vadd.f32 0.0, %v182
  %184 = vmatmul.f32.gmra.mxu0 %v53
  %v185 = vpop.f32.mrf.mxu0
  %v186 = vadd.f32 0.0, %v185
  %187 = vmatmul.f32.gmra.mxu0 %v56
  %v188 = vpop.f32.mrf.mxu0
  %v189 = vadd.f32 0.0, %v188
  %190 = vmatmul.f32.gmra.mxu0 %v59
  %v191 = vpop.f32.mrf.mxu0
  %v192 = vadd.f32 0.0, %v191
  %193 = vdwg.mxu0
  %194 = vst [vmem:[#allocation2] sm:$0xff] %v89
  %195 = vst [vmem:[#allocation2 + $0x8] sm:$0xff] %v130
  %196 = vst [vmem:[#allocation2 + $0x10] sm:$0xff] %v171
  %197 = vst [vmem:[#allocation2 + $0x18] sm:$0xff] %v92
  %198 = vst [vmem:[#allocation2 + $0x20] sm:$0xff] %v133
  %199 = vst [vmem:[#allocation2 + $0x28] sm:$0xff] %v174
  %200 = vst [vmem:[#allocation2 + $0x30] sm:$0xff] %v95
  %201 = vst [vmem:[#allocation2 + $0x38] sm:$0xff] %v136
  %202 = vst [vmem:[#allocation2 + $0x40] sm:$0xff] %v177
  %203 = vst [vmem:[#allocation2 + $0x48] sm:$0xff] %v98
  %204 = vst [vmem:[#allocation2 + $0x50] sm:$0xff] %v139
  %205 = vst [vmem:[#allocation2 + $0x58] sm:$0xff] %v180
  %206 = vst [vmem:[#allocation2 + $0x60] sm:$0xff] %v101
  %207 = vst [vmem:[#allocation2 + $0x68] sm:$0xff] %v142
  %208 = vst [vmem:[#allocation2 + $0x70] sm:$0xff] %v183
  %209 = vst [vmem:[#allocation2 + $0x78] sm:$0xff] %v104
  %210 = vst [vmem:[#allocation2 + $0x80] sm:$0xff] %v145
  %211 = vst [vmem:[#allocation2 + $0x88] sm:$0xff] %v186
  %212 = vst [vmem:[#allocation2 + $0x90] sm:$0xff] %v107
  %213 = vst [vmem:[#allocation2 + $0x98] sm:$0xff] %v148
  %214 = vst [vmem:[#allocation2 + $0xa0] sm:$0xff] %v189
  %215 = vst [vmem:[#allocation2 + $0xa8] sm:$0xff] %v110
  %216 = vst [vmem:[#allocation2 + $0xb0] sm:$0xff] %v151
  %217 = vst [vmem:[#allocation2 + $0xb8] sm:$0xff] %v192
  %v218 = vld [vmem:[%s2] sm:$0xff]
  %v219 = vld [vmem:[%s2 + $0x8] sm:$0xff]
  %v220 = vld [vmem:[%s2 + $0x10] sm:$0xff]
  %v221 = vld [vmem:[%s2 + $0x18] sm:$0xff]
  %v222 = vld [vmem:[%s2 + $0x20] sm:$0xff]
  %v223 = vld [vmem:[%s2 + $0x28] sm:$0xff]
  %v224 = vld [vmem:[%s2 + $0x30] sm:$0xff]
  %v225 = vld [vmem:[%s2 + $0x38] sm:$0xff]
  %v226 = vld [vmem:[%s2 + $0x40] sm:$0xff]
  %v227 = vld [vmem:[%s2 + $0x48] sm:$0xff]
  %v228 = vld [vmem:[%s2 + $0x50] sm:$0xff]
  %v229 = vld [vmem:[%s2 + $0x58] sm:$0xff]
  %v230 = vld [vmem:[%s2 + $0x60] sm:$0xff]
  %v231 = vld [vmem:[%s2 + $0x68] sm:$0xff]
  %v232 = vld [vmem:[%s2 + $0x70] sm:$0xff]
  %v233 = vld [vmem:[%s2 + $0x78] sm:$0xff]
  %v234 = vld [vmem:[%s2 + $0x80] sm:$0xff]
  %v235 = vld [vmem:[%s2 + $0x88] sm:$0xff]
  %v236 = vld [vmem:[%s2 + $0x90] sm:$0xff]
  %v237 = vld [vmem:[%s2 + $0x98] sm:$0xff]
  %v238 = vld [vmem:[%s2 + $0xa0] sm:$0xff]
  %v239 = vld [vmem:[%s2 + $0xa8] sm:$0xff]
  %v240 = vld [vmem:[%s2 + $0xb0] sm:$0xff]
  %v241 = vld [vmem:[%s2 + $0xb8] sm:$0xff]
  %v242 = vld [vmem:[%s2 + $0xc0] sm:$0xff]
  %v243 = vld [vmem:[%s2 + $0xc8] sm:$0xff]
  %v244 = vld [vmem:[%s2 + $0xd0] sm:$0xff]
  %v245 = vld [vmem:[%s2 + $0xd8] sm:$0xff]
  %v246 = vld [vmem:[%s2 + $0xe0] sm:$0xff]
  %v247 = vld [vmem:[%s2 + $0xe8] sm:$0xff]
  %v248 = vld [vmem:[%s2 + $0xf0] sm:$0xff]
  %v249 = vld [vmem:[%s2 + $0xf8] sm:$0xff]
  %v250 = vld [vmem:[%s2 + $0x100] sm:$0xff]
  %v251 = vld [vmem:[%s2 + $0x108] sm:$0xff]
  %v252 = vld [vmem:[%s2 + $0x110] sm:$0xff]
  %v253 = vld [vmem:[%s2 + $0x118] sm:$0xff]
  %v254 = vld [vmem:[%s2 + $0x120] sm:$0xff]
  %v255 = vld [vmem:[%s2 + $0x128] sm:$0xff]
  %v256 = vld [vmem:[%s2 + $0x130] sm:$0xff]
  %v257 = vld [vmem:[%s2 + $0x138] sm:$0xff]
  %v258 = vld [vmem:[%s2 + $0x140] sm:$0xff]
  %v259 = vld [vmem:[%s2 + $0x148] sm:$0xff]
  %v260 = vld [vmem:[%s2 + $0x150] sm:$0xff]
  %v261 = vld [vmem:[%s2 + $0x158] sm:$0xff]
  %v262 = vld [vmem:[%s2 + $0x160] sm:$0xff]
  %v263 = vld [vmem:[%s2 + $0x168] sm:$0xff]
  %v264 = vld [vmem:[%s2 + $0x170] sm:$0xff]
  %v265 = vld [vmem:[%s2 + $0x178] sm:$0xff]
  %v266 = vld [vmem:[%s3] sm:$0x1]
  %v268 = vperm.slane %v266, 0
  %v270 = vld [vmem:[#allocation2] sm:$0xff]
  %v271 = vld [vmem:[#allocation2 + $0x8] sm:$0xff]
  %v272 = vld [vmem:[#allocation2 + $0x10] sm:$0xff]
  %273 = vmatpush.msra.mxu0 %v263
  %274 = vmatpush.msra.mxu0 %v260
  %275 = vmatpush.msra.mxu0 %v257
  %276 = vmatpush.msra.mxu0 %v254
  %277 = vmatpush.msra.mxu0 %v251
  %278 = vmatpush.msra.mxu0 %v248
  %279 = vmatpush.msra.mxu0 %v245
  %280 = vmatpush.msra.mxu0 %v242
  %281 = vmatpush.msra.mxu0 %v239
  %282 = vmatpush.msra.mxu0 %v236
  %283 = vmatpush.msra.mxu0 %v233
  %284 = vmatpush.msra.mxu0 %v230
  %285 = vmatpush.msra.mxu0 %v227
  %286 = vmatpush.msra.mxu0 %v224
  %287 = vmatpush.msra.mxu0 %v221
  %288 = vmatpush.msra.mxu0 %v218
  %289 = vmatmul.f32.gmra.mxu0 0.0
  %v290 = vpop.f32.mrf.mxu0
  %v291 = vadd.f32 0.0, %v290
  %292 = vdwg.mxu0
  %293 = vmatpush.msra.mxu0 %v264
  %294 = vmatpush.msra.mxu0 %v261
  %295 = vmatpush.msra.mxu0 %v258
  %296 = vmatpush.msra.mxu0 %v255
  %297 = vmatpush.msra.mxu0 %v252
  %298 = vmatpush.msra.mxu0 %v249
  %299 = vmatpush.msra.mxu0 %v246
  %300 = vmatpush.msra.mxu0 %v243
  %301 = vmatpush.msra.mxu0 %v240
  %302 = vmatpush.msra.mxu0 %v237
  %303 = vmatpush.msra.mxu0 %v234
  %304 = vmatpush.msra.mxu0 %v231
  %305 = vmatpush.msra.mxu0 %v228
  %306 = vmatpush.msra.mxu0 %v225
  %307 = vmatpush.msra.mxu0 %v222
  %308 = vmatpush.msra.mxu0 %v219
  %309 = vmatmul.f32.gmra.mxu0 0.0
  %v310 = vpop.f32.mrf.mxu0
  %v311 = vadd.f32 0.0, %v310
  %312 = vdwg.mxu0
  %313 = vmatpush.msra.mxu0 %v265
  %314 = vmatpush.msra.mxu0 %v262
  %315 = vmatpush.msra.mxu0 %v259
  %316 = vmatpush.msra.mxu0 %v256
  %317 = vmatpush.msra.mxu0 %v253
  %318 = vmatpush.msra.mxu0 %v250
  %319 = vmatpush.msra.mxu0 %v247
  %320 = vmatpush.msra.mxu0 %v244
  %321 = vmatpush.msra.mxu0 %v241
  %322 = vmatpush.msra.mxu0 %v238
  %323 = vmatpush.msra.mxu0 %v235
  %324 = vmatpush.msra.mxu0 %v232
  %325 = vmatpush.msra.mxu0 %v229
  %326 = vmatpush.msra.mxu0 %v226
  %327 = vmatpush.msra.mxu0 %v223
  %328 = vmatpush.msra.mxu0 %v220
  %329 = vmatmul.f32.gmra.mxu0 0.0
  %v330 = vpop.f32.mrf.mxu0
  %v331 = vadd.f32 0.0, %v330
  %332 = vdwg.mxu0
  %v333 = vadd.f32 %v270, %v291
  %v334 = vmul.f32 %v333, 0.5
  %v335 = vtanh.pop %v334
  %v336 = vmul.f32 %v335, 0.5
  %v337 = vadd.f32 %v336, 0.5
  %v338 = vadd.f32 %v271, %v311
  %v339 = vmul.f32 %v338, 0.5
  %v340 = vtanh.pop %v339
  %v341 = vmul.f32 %v340, 0.5
  %v342 = vadd.f32 %v341, 0.5
  %v343 = vadd.f32 %v331, %v268
  %v344 = vmul.f32 %v337, %v343
  %v345 = vadd.f32 %v272, %v344
  %v346 = vtanh.pop %v345
  %v347 = vsub.f32 1.0, %v342
  %v348 = vmul.f32 %v347, %v346
  %v349 = vmul.f32 %v342, 0.0
  %v350 = vadd.f32 %v348, %v349
  %s351 = scalar_lea.vmem [#allocation2], 24
  %v352 = vld [vmem:[%s351] sm:$0xff]
  %v353 = vld [vmem:[%s351 + $0x8] sm:$0xff]
  %v354 = vld [vmem:[%s351 + $0x10] sm:$0xff]
  %355 = vmatpush.msra.mxu0 %v263
  %356 = vmatpush.msra.mxu0 %v260
  %357 = vmatpush.msra.mxu0 %v257
  %358 = vmatpush.msra.mxu0 %v254
  %359 = vmatpush.msra.mxu0 %v251
  %360 = vmatpush.msra.mxu0 %v248
  %361 = vmatpush.msra.mxu0 %v245
  %362 = vmatpush.msra.mxu0 %v242
  %363 = vmatpush.msra.mxu0 %v239
  %364 = vmatpush.msra.mxu0 %v236
  %365 = vmatpush.msra.mxu0 %v233
  %366 = vmatpush.msra.mxu0 %v230
  %367 = vmatpush.msra.mxu0 %v227
  %368 = vmatpush.msra.mxu0 %v224
  %369 = vmatpush.msra.mxu0 %v221
  %370 = vmatpush.msra.mxu0 %v218
  %371 = vmatmul.f32.gmra.mxu0 %v350
  %v372 = vpop.f32.mrf.mxu0
  %v373 = vadd.f32 0.0, %v372
  %374 = vdwg.mxu0
  %375 = vmatpush.msra.mxu0 %v264
  %376 = vmatpush.msra.mxu0 %v261
  %377 = vmatpush.msra.mxu0 %v258
  %378 = vmatpush.msra.mxu0 %v255
  %379 = vmatpush.msra.mxu0 %v252
  %380 = vmatpush.msra.mxu0 %v249
  %381 = vmatpush.msra.mxu0 %v246
  %382 = vmatpush.msra.mxu0 %v243
  %383 = vmatpush.msra.mxu0 %v240
  %384 = vmatpush.msra.mxu0 %v237
  %385 = vmatpush.msra.mxu0 %v234
  %386 = vmatpush.msra.mxu0 %v231
  %387 = vmatpush.msra.mxu0 %v228
  %388 = vmatpush.msra.mxu0 %v225
  %389 = vmatpush.msra.mxu0 %v222
  %390 = vmatpush.msra.mxu0 %v219
  %391 = vmatmul.f32.gmra.mxu0 %v350
  %v392 = vpop.f32.mrf.mxu0
  %v393 = vadd.f32 0.0, %v392
  %394 = vdwg.mxu0
  %395 = vmatpush.msra.mxu0 %v265
  %396 = vmatpush.msra.mxu0 %v262
  %397 = vmatpush.msra.mxu0 %v259
  %398 = vmatpush.msra.mxu0 %v256
  %399 = vmatpush.msra.mxu0 %v253
  %400 = vmatpush.msra.mxu0 %v250
  %401 = vmatpush.msra.mxu0 %v247
  %402 = vmatpush.msra.mxu0 %v244
  %403 = vmatpush.msra.mxu0 %v241
  %404 = vmatpush.msra.mxu0 %v238
  %405 = vmatpush.msra.mxu0 %v235
  %406 = vmatpush.msra.mxu0 %v232
  %407 = vmatpush.msra.mxu0 %v229
  %408 = vmatpush.msra.mxu0 %v226
  %409 = vmatpush.msra.mxu0 %v223
  %410 = vmatpush.msra.mxu0 %v220
  %411 = vmatmul.f32.gmra.mxu0 %v350
  %v412 = vpop.f32.mrf.mxu0
  %v413 = vadd.f32 0.0, %v412
  %414 = vdwg.mxu0
  %v415 = vadd.f32 %v352, %v373
  %v416 = vmul.f32 %v415, 0.5
  %v417 = vtanh.pop %v416
  %v418 = vmul.f32 %v417, 0.5
  %v419 = vadd.f32 %v418, 0.5
  %v420 = vadd.f32 %v353, %v393
  %v421 = vmul.f32 %v420, 0.5
  %v422 = vtanh.pop %v421
  %v423 = vmul.f32 %v422, 0.5
  %v424 = vadd.f32 %v423, 0.5
  %v425 = vadd.f32 %v413, %v268
  %v426 = vmul.f32 %v419, %v425
  %v427 = vadd.f32 %v354, %v426
  %v428 = vtanh.pop %v427
  %v429 = vsub.f32 1.0, %v424
  %v430 = vmul.f32 %v429, %v428
  %v431 = vmul.f32 %v424, %v350
  %v432 = vadd.f32 %v430, %v431
  %s433 = scalar_lea.vmem [#allocation2], 48
  %v434 = vld [vmem:[%s433] sm:$0xff]
  %v435 = vld [vmem:[%s433 + $0x8] sm:$0xff]
  %v436 = vld [vmem:[%s433 + $0x10] sm:$0xff]
  %437 = vmatpush.msra.mxu0 %v263
  %438 = vmatpush.msra.mxu0 %v260
  %439 = vmatpush.msra.mxu0 %v257
  %440 = vmatpush.msra.mxu0 %v254
  %441 = vmatpush.msra.mxu0 %v251
  %442 = vmatpush.msra.mxu0 %v248
  %443 = vmatpush.msra.mxu0 %v245
  %444 = vmatpush.msra.mxu0 %v242
  %445 = vmatpush.msra.mxu0 %v239
  %446 = vmatpush.msra.mxu0 %v236
  %447 = vmatpush.msra.mxu0 %v233
  %448 = vmatpush.msra.mxu0 %v230
  %449 = vmatpush.msra.mxu0 %v227
  %450 = vmatpush.msra.mxu0 %v224
  %451 = vmatpush.msra.mxu0 %v221
  %452 = vmatpush.msra.mxu0 %v218
  %453 = vmatmul.f32.gmra.mxu0 %v432
  %v454 = vpop.f32.mrf.mxu0
  %v455 = vadd.f32 0.0, %v454
  %456 = vdwg.mxu0
  %457 = vmatpush.msra.mxu0 %v264
  %458 = vmatpush.msra.mxu0 %v261
  %459 = vmatpush.msra.mxu0 %v258
  %460 = vmatpush.msra.mxu0 %v255
  %461 = vmatpush.msra.mxu0 %v252
  %462 = vmatpush.msra.mxu0 %v249
  %463 = vmatpush.msra.mxu0 %v246
  %464 = vmatpush.msra.mxu0 %v243
  %465 = vmatpush.msra.mxu0 %v240
  %466 = vmatpush.msra.mxu0 %v237
  %467 = vmatpush.msra.mxu0 %v234
  %468 = vmatpush.msra.mxu0 %v231
  %469 = vmatpush.msra.mxu0 %v228
  %470 = vmatpush.msra.mxu0 %v225
  %471 = vmatpush.msra.mxu0 %v222
  %472 = vmatpush.msra.mxu0 %v219
  %473 = vmatmul.f32.gmra.mxu0 %v432
  %v474 = vpop.f32.mrf.mxu0
  %v475 = vadd.f32 0.0, %v474
  %476 = vdwg.mxu0
  %477 = vmatpush.msra.mxu0 %v265
  %478 = vmatpush.msra.mxu0 %v262
  %479 = vmatpush.msra.mxu0 %v259
  %480 = vmatpush.msra.mxu0 %v256
  %481 = vmatpush.msra.mxu0 %v253
  %482 = vmatpush.msra.mxu0 %v250
  %483 = vmatpush.msra.mxu0 %v247
  %484 = vmatpush.msra.mxu0 %v244
  %485 = vmatpush.msra.mxu0 %v241
  %486 = vmatpush.msra.mxu0 %v238
  %487 = vmatpush.msra.mxu0 %v235
  %488 = vmatpush.msra.mxu0 %v232
  %489 = vmatpush.msra.mxu0 %v229
  %490 = vmatpush.msra.mxu0 %v226
  %491 = vmatpush.msra.mxu0 %v223
  %492 = vmatpush.msra.mxu0 %v220
  %493 = vmatmul.f32.gmra.mxu0 %v432
  %v494 = vpop.f32.mrf.mxu0
  %v495 = vadd.f32 0.0, %v494
  %496 = vdwg.mxu0
  %v497 = vadd.f32 %v434, %v455
  %v498 = vmul.f32 %v497, 0.5
  %v499 = vtanh.pop %v498
  %v500 = vmul.f32 %v499, 0.5
  %v501 = vadd.f32 %v500, 0.5
  %v502 = vadd.f32 %v435, %v475
  %v503 = vmul.f32 %v502, 0.5
  %v504 = vtanh.pop %v503
  %v505 = vmul.f32 %v504, 0.5
  %v506 = vadd.f32 %v505, 0.5
  %v507 = vadd.f32 %v495, %v268
  %v508 = vmul.f32 %v501, %v507
  %v509 = vadd.f32 %v436, %v508
  %v510 = vtanh.pop %v509
  %v511 = vsub.f32 1.0, %v506
  %v512 = vmul.f32 %v511, %v510
  %v513 = vmul.f32 %v506, %v432
  %v514 = vadd.f32 %v512, %v513
  %s515 = scalar_lea.vmem [#allocation2], 72
  %v516 = vld [vmem:[%s515] sm:$0xff]
  %v517 = vld [vmem:[%s515 + $0x8] sm:$0xff]
  %v518 = vld [vmem:[%s515 + $0x10] sm:$0xff]
  %519 = vmatpush.msra.mxu0 %v263
  %520 = vmatpush.msra.mxu0 %v260
  %521 = vmatpush.msra.mxu0 %v257
  %522 = vmatpush.msra.mxu0 %v254
  %523 = vmatpush.msra.mxu0 %v251
  %524 = vmatpush.msra.mxu0 %v248
  %525 = vmatpush.msra.mxu0 %v245
  %526 = vmatpush.msra.mxu0 %v242
  %527 = vmatpush.msra.mxu0 %v239
  %528 = vmatpush.msra.mxu0 %v236
  %529 = vmatpush.msra.mxu0 %v233
  %530 = vmatpush.msra.mxu0 %v230
  %531 = vmatpush.msra.mxu0 %v227
  %532 = vmatpush.msra.mxu0 %v224
  %533 = vmatpush.msra.mxu0 %v221
  %534 = vmatpush.msra.mxu0 %v218
  %535 = vmatmul.f32.gmra.mxu0 %v514
  %v536 = vpop.f32.mrf.mxu0
  %v537 = vadd.f32 0.0, %v536
  %538 = vdwg.mxu0
  %539 = vmatpush.msra.mxu0 %v264
  %540 = vmatpush.msra.mxu0 %v261
  %541 = vmatpush.msra.mxu0 %v258
  %542 = vmatpush.msra.mxu0 %v255
  %543 = vmatpush.msra.mxu0 %v252
  %544 = vmatpush.msra.mxu0 %v249
  %545 = vmatpush.msra.mxu0 %v246
  %546 = vmatpush.msra.mxu0 %v243
  %547 = vmatpush.msra.mxu0 %v240
  %548 = vmatpush.msra.mxu0 %v237
  %549 = vmatpush.msra.mxu0 %v234
  %550 = vmatpush.msra.mxu0 %v231
  %551 = vmatpush.msra.mxu0 %v228
  %552 = vmatpush.msra.mxu0 %v225
  %553 = vmatpush.msra.mxu0 %v222
  %554 = vmatpush.msra.mxu0 %v219
  %555 = vmatmul.f32.gmra.mxu0 %v514
  %v556 = vpop.f32.mrf.mxu0
  %v557 = vadd.f32 0.0, %v556
  %558 = vdwg.mxu0
  %559 = vmatpush.msra.mxu0 %v265
  %560 = vmatpush.msra.mxu0 %v262
  %561 = vmatpush.msra.mxu0 %v259
  %562 = vmatpush.msra.mxu0 %v256
  %563 = vmatpush.msra.mxu0 %v253
  %564 = vmatpush.msra.mxu0 %v250
  %565 = vmatpush.msra.mxu0 %v247
  %566 = vmatpush.msra.mxu0 %v244
  %567 = vmatpush.msra.mxu0 %v241
  %568 = vmatpush.msra.mxu0 %v238
  %569 = vmatpush.msra.mxu0 %v235
  %570 = vmatpush.msra.mxu0 %v232
  %571 = vmatpush.msra.mxu0 %v229
  %572 = vmatpush.msra.mxu0 %v226
  %573 = vmatpush.msra.mxu0 %v223
  %574 = vmatpush.msra.mxu0 %v220
  %575 = vmatmul.f32.gmra.mxu0 %v514
  %v576 = vpop.f32.mrf.mxu0
  %v577 = vadd.f32 0.0, %v576
  %578 = vdwg.mxu0
  %v579 = vadd.f32 %v516, %v537
  %v580 = vmul.f32 %v579, 0.5
  %v581 = vtanh.pop %v580
  %v582 = vmul.f32 %v581, 0.5
  %v583 = vadd.f32 %v582, 0.5
  %v584 = vadd.f32 %v517, %v557
  %v585 = vmul.f32 %v584, 0.5
  %v586 = vtanh.pop %v585
  %v587 = vmul.f32 %v586, 0.5
  %v588 = vadd.f32 %v587, 0.5
  %v589 = vadd.f32 %v577, %v268
  %v590 = vmul.f32 %v583, %v589
  %v591 = vadd.f32 %v518, %v590
  %v592 = vtanh.pop %v591
  %v593 = vsub.f32 1.0, %v588
  %v594 = vmul.f32 %v593, %v592
  %v595 = vmul.f32 %v588, %v514
  %v596 = vadd.f32 %v594, %v595
  %s597 = scalar_lea.vmem [#allocation2], 96
  %v598 = vld [vmem:[%s597] sm:$0xff]
  %v599 = vld [vmem:[%s597 + $0x8] sm:$0xff]
  %v600 = vld [vmem:[%s597 + $0x10] sm:$0xff]
  %601 = vmatpush.msra.mxu0 %v263
  %602 = vmatpush.msra.mxu0 %v260
  %603 = vmatpush.msra.mxu0 %v257
  %604 = vmatpush.msra.mxu0 %v254
  %605 = vmatpush.msra.mxu0 %v251
  %606 = vmatpush.msra.mxu0 %v248
  %607 = vmatpush.msra.mxu0 %v245
  %608 = vmatpush.msra.mxu0 %v242
  %609 = vmatpush.msra.mxu0 %v239
  %610 = vmatpush.msra.mxu0 %v236
  %611 = vmatpush.msra.mxu0 %v233
  %612 = vmatpush.msra.mxu0 %v230
  %613 = vmatpush.msra.mxu0 %v227
  %614 = vmatpush.msra.mxu0 %v224
  %615 = vmatpush.msra.mxu0 %v221
  %616 = vmatpush.msra.mxu0 %v218
  %617 = vmatmul.f32.gmra.mxu0 %v596
  %v618 = vpop.f32.mrf.mxu0
  %v619 = vadd.f32 0.0, %v618
  %620 = vdwg.mxu0
  %621 = vmatpush.msra.mxu0 %v264
  %622 = vmatpush.msra.mxu0 %v261
  %623 = vmatpush.msra.mxu0 %v258
  %624 = vmatpush.msra.mxu0 %v255
  %625 = vmatpush.msra.mxu0 %v252
  %626 = vmatpush.msra.mxu0 %v249
  %627 = vmatpush.msra.mxu0 %v246
  %628 = vmatpush.msra.mxu0 %v243
  %629 = vmatpush.msra.mxu0 %v240
  %630 = vmatpush.msra.mxu0 %v237
  %631 = vmatpush.msra.mxu0 %v234
  %632 = vmatpush.msra.mxu0 %v231
  %633 = vmatpush.msra.mxu0 %v228
  %634 = vmatpush.msra.mxu0 %v225
  %635 = vmatpush.msra.mxu0 %v222
  %636 = vmatpush.msra.mxu0 %v219
  %637 = vmatmul.f32.gmra.mxu0 %v596
  %v638 = vpop.f32.mrf.mxu0
  %v639 = vadd.f32 0.0, %v638
  %640 = vdwg.mxu0
  %641 = vmatpush.msra.mxu0 %v265
  %642 = vmatpush.msra.mxu0 %v262
  %643 = vmatpush.msra.mxu0 %v259
  %644 = vmatpush.msra.mxu0 %v256
  %645 = vmatpush.msra.mxu0 %v253
  %646 = vmatpush.msra.mxu0 %v250
  %647 = vmatpush.msra.mxu0 %v247
  %648 = vmatpush.msra.mxu0 %v244
  %649 = vmatpush.msra.mxu0 %v241
  %650 = vmatpush.msra.mxu0 %v238
  %651 = vmatpush.msra.mxu0 %v235
  %652 = vmatpush.msra.mxu0 %v232
  %653 = vmatpush.msra.mxu0 %v229
  %654 = vmatpush.msra.mxu0 %v226
  %655 = vmatpush.msra.mxu0 %v223
  %656 = vmatpush.msra.mxu0 %v220
  %657 = vmatmul.f32.gmra.mxu0 %v596
  %v658 = vpop.f32.mrf.mxu0
  %v659 = vadd.f32 0.0, %v658
  %660 = vdwg.mxu0
  %v661 = vadd.f32 %v598, %v619
  %v662 = vmul.f32 %v661, 0.5
  %v663 = vtanh.pop %v662
  %v664 = vmul.f32 %v663, 0.5
  %v665 = vadd.f32 %v664, 0.5
  %v666 = vadd.f32 %v599, %v639
  %v667 = vmul.f32 %v666, 0.5
  %v668 = vtanh.pop %v667
  %v669 = vmul.f32 %v668, 0.5
  %v670 = vadd.f32 %v669, 0.5
  %v671 = vadd.f32 %v659, %v268
  %v672 = vmul.f32 %v665, %v671
  %v673 = vadd.f32 %v600, %v672
  %v674 = vtanh.pop %v673
  %v675 = vsub.f32 1.0, %v670
  %v676 = vmul.f32 %v675, %v674
  %v677 = vmul.f32 %v670, %v596
  %v678 = vadd.f32 %v676, %v677
  %s679 = scalar_lea.vmem [#allocation2], 120
  %v680 = vld [vmem:[%s679] sm:$0xff]
  %v681 = vld [vmem:[%s679 + $0x8] sm:$0xff]
  %v682 = vld [vmem:[%s679 + $0x10] sm:$0xff]
  %683 = vmatpush.msra.mxu0 %v263
  %684 = vmatpush.msra.mxu0 %v260
  %685 = vmatpush.msra.mxu0 %v257
  %686 = vmatpush.msra.mxu0 %v254
  %687 = vmatpush.msra.mxu0 %v251
  %688 = vmatpush.msra.mxu0 %v248
  %689 = vmatpush.msra.mxu0 %v245
  %690 = vmatpush.msra.mxu0 %v242
  %691 = vmatpush.msra.mxu0 %v239
  %692 = vmatpush.msra.mxu0 %v236
  %693 = vmatpush.msra.mxu0 %v233
  %694 = vmatpush.msra.mxu0 %v230
  %695 = vmatpush.msra.mxu0 %v227
  %696 = vmatpush.msra.mxu0 %v224
  %697 = vmatpush.msra.mxu0 %v221
  %698 = vmatpush.msra.mxu0 %v218
  %699 = vmatmul.f32.gmra.mxu0 %v678
  %v700 = vpop.f32.mrf.mxu0
  %v701 = vadd.f32 0.0, %v700
  %702 = vdwg.mxu0
  %703 = vmatpush.msra.mxu0 %v264
  %704 = vmatpush.msra.mxu0 %v261
  %705 = vmatpush.msra.mxu0 %v258
  %706 = vmatpush.msra.mxu0 %v255
  %707 = vmatpush.msra.mxu0 %v252
  %708 = vmatpush.msra.mxu0 %v249
  %709 = vmatpush.msra.mxu0 %v246
  %710 = vmatpush.msra.mxu0 %v243
  %711 = vmatpush.msra.mxu0 %v240
  %712 = vmatpush.msra.mxu0 %v237
  %713 = vmatpush.msra.mxu0 %v234
  %714 = vmatpush.msra.mxu0 %v231
  %715 = vmatpush.msra.mxu0 %v228
  %716 = vmatpush.msra.mxu0 %v225
  %717 = vmatpush.msra.mxu0 %v222
  %718 = vmatpush.msra.mxu0 %v219
  %719 = vmatmul.f32.gmra.mxu0 %v678
  %v720 = vpop.f32.mrf.mxu0
  %v721 = vadd.f32 0.0, %v720
  %722 = vdwg.mxu0
  %723 = vmatpush.msra.mxu0 %v265
  %724 = vmatpush.msra.mxu0 %v262
  %725 = vmatpush.msra.mxu0 %v259
  %726 = vmatpush.msra.mxu0 %v256
  %727 = vmatpush.msra.mxu0 %v253
  %728 = vmatpush.msra.mxu0 %v250
  %729 = vmatpush.msra.mxu0 %v247
  %730 = vmatpush.msra.mxu0 %v244
  %731 = vmatpush.msra.mxu0 %v241
  %732 = vmatpush.msra.mxu0 %v238
  %733 = vmatpush.msra.mxu0 %v235
  %734 = vmatpush.msra.mxu0 %v232
  %735 = vmatpush.msra.mxu0 %v229
  %736 = vmatpush.msra.mxu0 %v226
  %737 = vmatpush.msra.mxu0 %v223
  %738 = vmatpush.msra.mxu0 %v220
  %739 = vmatmul.f32.gmra.mxu0 %v678
  %v740 = vpop.f32.mrf.mxu0
  %v741 = vadd.f32 0.0, %v740
  %742 = vdwg.mxu0
  %v743 = vadd.f32 %v680, %v701
  %v744 = vmul.f32 %v743, 0.5
  %v745 = vtanh.pop %v744
  %v746 = vmul.f32 %v745, 0.5
  %v747 = vadd.f32 %v746, 0.5
  %v748 = vadd.f32 %v681, %v721
  %v749 = vmul.f32 %v748, 0.5
  %v750 = vtanh.pop %v749
  %v751 = vmul.f32 %v750, 0.5
  %v752 = vadd.f32 %v751, 0.5
  %v753 = vadd.f32 %v741, %v268
  %v754 = vmul.f32 %v747, %v753
  %v755 = vadd.f32 %v682, %v754
  %v756 = vtanh.pop %v755
  %v757 = vsub.f32 1.0, %v752
  %v758 = vmul.f32 %v757, %v756
  %v759 = vmul.f32 %v752, %v678
  %v760 = vadd.f32 %v758, %v759
  %s761 = scalar_lea.vmem [#allocation2], 144
  %v762 = vld [vmem:[%s761] sm:$0xff]
  %v763 = vld [vmem:[%s761 + $0x8] sm:$0xff]
  %v764 = vld [vmem:[%s761 + $0x10] sm:$0xff]
  %765 = vmatpush.msra.mxu0 %v263
  %766 = vmatpush.msra.mxu0 %v260
  %767 = vmatpush.msra.mxu0 %v257
  %768 = vmatpush.msra.mxu0 %v254
  %769 = vmatpush.msra.mxu0 %v251
  %770 = vmatpush.msra.mxu0 %v248
  %771 = vmatpush.msra.mxu0 %v245
  %772 = vmatpush.msra.mxu0 %v242
  %773 = vmatpush.msra.mxu0 %v239
  %774 = vmatpush.msra.mxu0 %v236
  %775 = vmatpush.msra.mxu0 %v233
  %776 = vmatpush.msra.mxu0 %v230
  %777 = vmatpush.msra.mxu0 %v227
  %778 = vmatpush.msra.mxu0 %v224
  %779 = vmatpush.msra.mxu0 %v221
  %780 = vmatpush.msra.mxu0 %v218
  %781 = vmatmul.f32.gmra.mxu0 %v760
  %v782 = vpop.f32.mrf.mxu0
  %v783 = vadd.f32 0.0, %v782
  %784 = vdwg.mxu0
  %785 = vmatpush.msra.mxu0 %v264
  %786 = vmatpush.msra.mxu0 %v261
  %787 = vmatpush.msra.mxu0 %v258
  %788 = vmatpush.msra.mxu0 %v255
  %789 = vmatpush.msra.mxu0 %v252
  %790 = vmatpush.msra.mxu0 %v249
  %791 = vmatpush.msra.mxu0 %v246
  %792 = vmatpush.msra.mxu0 %v243
  %793 = vmatpush.msra.mxu0 %v240
  %794 = vmatpush.msra.mxu0 %v237
  %795 = vmatpush.msra.mxu0 %v234
  %796 = vmatpush.msra.mxu0 %v231
  %797 = vmatpush.msra.mxu0 %v228
  %798 = vmatpush.msra.mxu0 %v225
  %799 = vmatpush.msra.mxu0 %v222
  %800 = vmatpush.msra.mxu0 %v219
  %801 = vmatmul.f32.gmra.mxu0 %v760
  %v802 = vpop.f32.mrf.mxu0
  %v803 = vadd.f32 0.0, %v802
  %804 = vdwg.mxu0
  %805 = vmatpush.msra.mxu0 %v265
  %806 = vmatpush.msra.mxu0 %v262
  %807 = vmatpush.msra.mxu0 %v259
  %808 = vmatpush.msra.mxu0 %v256
  %809 = vmatpush.msra.mxu0 %v253
  %810 = vmatpush.msra.mxu0 %v250
  %811 = vmatpush.msra.mxu0 %v247
  %812 = vmatpush.msra.mxu0 %v244
  %813 = vmatpush.msra.mxu0 %v241
  %814 = vmatpush.msra.mxu0 %v238
  %815 = vmatpush.msra.mxu0 %v235
  %816 = vmatpush.msra.mxu0 %v232
  %817 = vmatpush.msra.mxu0 %v229
  %818 = vmatpush.msra.mxu0 %v226
  %819 = vmatpush.msra.mxu0 %v223
  %820 = vmatpush.msra.mxu0 %v220
  %821 = vmatmul.f32.gmra.mxu0 %v760
  %v822 = vpop.f32.mrf.mxu0
  %v823 = vadd.f32 0.0, %v822
  %824 = vdwg.mxu0
  %v825 = vadd.f32 %v762, %v783
  %v826 = vmul.f32 %v825, 0.5
  %v827 = vtanh.pop %v826
  %v828 = vmul.f32 %v827, 0.5
  %v829 = vadd.f32 %v828, 0.5
  %v830 = vadd.f32 %v763, %v803
  %v831 = vmul.f32 %v830, 0.5
  %v832 = vtanh.pop %v831
  %v833 = vmul.f32 %v832, 0.5
  %v834 = vadd.f32 %v833, 0.5
  %v835 = vadd.f32 %v823, %v268
  %v836 = vmul.f32 %v829, %v835
  %v837 = vadd.f32 %v764, %v836
  %v838 = vtanh.pop %v837
  %v839 = vsub.f32 1.0, %v834
  %v840 = vmul.f32 %v839, %v838
  %v841 = vmul.f32 %v834, %v760
  %v842 = vadd.f32 %v840, %v841
  %s843 = scalar_lea.vmem [#allocation2], 168
  %v844 = vld [vmem:[%s843] sm:$0xff]
  %v845 = vld [vmem:[%s843 + $0x8] sm:$0xff]
  %v846 = vld [vmem:[%s843 + $0x10] sm:$0xff]
  %847 = vmatpush.msra.mxu0 %v263
  %848 = vmatpush.msra.mxu0 %v260
  %849 = vmatpush.msra.mxu0 %v257
  %850 = vmatpush.msra.mxu0 %v254
  %851 = vmatpush.msra.mxu0 %v251
  %852 = vmatpush.msra.mxu0 %v248
  %853 = vmatpush.msra.mxu0 %v245
  %854 = vmatpush.msra.mxu0 %v242
  %855 = vmatpush.msra.mxu0 %v239
  %856 = vmatpush.msra.mxu0 %v236
  %857 = vmatpush.msra.mxu0 %v233
  %858 = vmatpush.msra.mxu0 %v230
  %859 = vmatpush.msra.mxu0 %v227
  %860 = vmatpush.msra.mxu0 %v224
  %861 = vmatpush.msra.mxu0 %v221
  %862 = vmatpush.msra.mxu0 %v218
  %863 = vmatmul.f32.gmra.mxu0 %v842
  %v864 = vpop.f32.mrf.mxu0
  %v865 = vadd.f32 0.0, %v864
  %866 = vdwg.mxu0
  %867 = vmatpush.msra.mxu0 %v264
  %868 = vmatpush.msra.mxu0 %v261
  %869 = vmatpush.msra.mxu0 %v258
  %870 = vmatpush.msra.mxu0 %v255
  %871 = vmatpush.msra.mxu0 %v252
  %872 = vmatpush.msra.mxu0 %v249
  %873 = vmatpush.msra.mxu0 %v246
  %874 = vmatpush.msra.mxu0 %v243
  %875 = vmatpush.msra.mxu0 %v240
  %876 = vmatpush.msra.mxu0 %v237
  %877 = vmatpush.msra.mxu0 %v234
  %878 = vmatpush.msra.mxu0 %v231
  %879 = vmatpush.msra.mxu0 %v228
  %880 = vmatpush.msra.mxu0 %v225
  %881 = vmatpush.msra.mxu0 %v222
  %882 = vmatpush.msra.mxu0 %v219
  %883 = vmatmul.f32.gmra.mxu0 %v842
  %v884 = vpop.f32.mrf.mxu0
  %v885 = vadd.f32 0.0, %v884
  %886 = vdwg.mxu0
  %887 = vmatpush.msra.mxu0 %v265
  %888 = vmatpush.msra.mxu0 %v262
  %889 = vmatpush.msra.mxu0 %v259
  %890 = vmatpush.msra.mxu0 %v256
  %891 = vmatpush.msra.mxu0 %v253
  %892 = vmatpush.msra.mxu0 %v250
  %893 = vmatpush.msra.mxu0 %v247
  %894 = vmatpush.msra.mxu0 %v244
  %895 = vmatpush.msra.mxu0 %v241
  %896 = vmatpush.msra.mxu0 %v238
  %897 = vmatpush.msra.mxu0 %v235
  %898 = vmatpush.msra.mxu0 %v232
  %899 = vmatpush.msra.mxu0 %v229
  %900 = vmatpush.msra.mxu0 %v226
  %901 = vmatpush.msra.mxu0 %v223
  %902 = vmatpush.msra.mxu0 %v220
  %903 = vmatmul.f32.gmra.mxu0 %v842
  %v904 = vpop.f32.mrf.mxu0
  %v905 = vadd.f32 0.0, %v904
  %906 = vdwg.mxu0
  %v907 = vadd.f32 %v844, %v865
  %v908 = vmul.f32 %v907, 0.5
  %v909 = vtanh.pop %v908
  %v910 = vmul.f32 %v909, 0.5
  %v911 = vadd.f32 %v910, 0.5
  %v912 = vadd.f32 %v845, %v885
  %v913 = vmul.f32 %v912, 0.5
  %v914 = vtanh.pop %v913
  %v915 = vmul.f32 %v914, 0.5
  %v916 = vadd.f32 %v915, 0.5
  %v917 = vadd.f32 %v905, %v268
  %v918 = vmul.f32 %v911, %v917
  %v919 = vadd.f32 %v846, %v918
  %v920 = vtanh.pop %v919
  %v921 = vsub.f32 1.0, %v916
  %v922 = vmul.f32 %v921, %v920
  %v923 = vmul.f32 %v916, %v842
  %v924 = vadd.f32 %v922, %v923
  %v925 = vld [vmem:[%s4] sm:$0xff]
  %v926 = vld [vmem:[%s4 + $0x8] sm:$0xff]
  %v927 = vld [vmem:[%s4 + $0x10] sm:$0xff]
  %v928 = vld [vmem:[%s4 + $0x18] sm:$0xff]
  %v929 = vld [vmem:[%s4 + $0x20] sm:$0xff]
  %v930 = vld [vmem:[%s4 + $0x28] sm:$0xff]
  %v931 = vld [vmem:[%s4 + $0x30] sm:$0xff]
  %v932 = vld [vmem:[%s4 + $0x38] sm:$0xff]
  %v933 = vld [vmem:[%s4 + $0x40] sm:$0xff]
  %v934 = vld [vmem:[%s4 + $0x48] sm:$0xff]
  %v935 = vld [vmem:[%s4 + $0x50] sm:$0xff]
  %v936 = vld [vmem:[%s4 + $0x58] sm:$0xff]
  %v937 = vld [vmem:[%s4 + $0x60] sm:$0xff]
  %v938 = vld [vmem:[%s4 + $0x68] sm:$0xff]
  %v939 = vld [vmem:[%s4 + $0x70] sm:$0xff]
  %v940 = vld [vmem:[%s4 + $0x78] sm:$0xff]
  %v941 = vld [vmem:[%s5] sm:$0x1]
  %v943 = vperm.slane %v941, 0
  %945 = vmatpush.msra.mxu0 %v940
  %946 = vmatpush.msra.mxu0 %v939
  %947 = vmatpush.msra.mxu0 %v938
  %948 = vmatpush.msra.mxu0 %v937
  %949 = vmatpush.msra.mxu0 %v936
  %950 = vmatpush.msra.mxu0 %v935
  %951 = vmatpush.msra.mxu0 %v934
  %952 = vmatpush.msra.mxu0 %v933
  %953 = vmatpush.msra.mxu0 %v932
  %954 = vmatpush.msra.mxu0 %v931
  %955 = vmatpush.msra.mxu0 %v930
  %956 = vmatpush.msra.mxu0 %v929
  %957 = vmatpush.msra.mxu0 %v928
  %958 = vmatpush.msra.mxu0 %v927
  %959 = vmatpush.msra.mxu0 %v926
  %960 = vmatpush.msra.mxu0 %v925
  %961 = vmatmul.f32.gmra.mxu0 %v924
  %v962 = vpop.f32.mrf.mxu0
  %v963 = vadd.f32 %v943, %v962
  %964 = vdwg.mxu0
  %965 = vst [vmem:[%s6] sm:$0xff] %v963
  %v966 = vxor.u32 %v963, 2147483648
  %v967 = vmul.f32 %v966, 1.442695
  %v968 = vpow.pop %v967
  %v969 = vadd.f32 %v968, 1.0
  %v970 = vrcp.pop %v969
  %v971 = vmul.f32 %v969, %v970
  %v972 = vsub.f32 1.0, %v971
  %v973 = vmul.f32 %v970, %v972
  %v974 = vadd.f32 %v970, %v973
  %vm975 = vweird.f32 %v969
  %vm976 = vweird.f32 %v970
  %vm977 = vmor %vm975, %vm976
  %v978 = vsel %vm977, %v970, %v974
  %v979 = vand.u32 2147483647, %v969
  %vm980 = vcmp.eq.f32.partialorder %v979, 8.507059e+37
  %v981 = vand.u32 %v969, 2147483648
  %v982 = vor.u32 1.1754944e-38, %v981
  %v983 = vsel %vm980, %v982, %v978
  %v984 = vmul.f32 1.0, %v983
  %985 = vst [vmem:[%s7] sm:$0xff] %v984
  // Predicated region
  $region26: #{discriminator_forward.1} parent=0 // pred_check
    _
  $region27: #{discriminator_forward.1} parent=0 // pred_check_branch
    %987 = sbr.rel (0) target = $region29
  $region28: #{discriminator_forward.1} parent=0 // pred_region
    _
  $region29: #{discriminator_forward.1} parent=0 // pred_fallthru
    _
  // Predicated region
  $region30: #{discriminator_forward.1} parent=0 // pred_check
    _
  $region31: #{discriminator_forward.1} parent=0 // pred_check_branch
    %989 = sbr.rel (0) target = $region33
  $region32: #{discriminator_forward.1} parent=0 // pred_region
    _
  $region33: #{discriminator_forward.1} parent=0 // pred_fallthru
    _
  // Predicated region
  $region34: #{discriminator_forward.1} parent=0 // pred_check
    _
  $region35: #{discriminator_forward.1} parent=0 // pred_check_branch
    %991 = sbr.rel (0) target = $region37
  $region36: #{discriminator_forward.1} parent=0 // pred_region
    _
  $region37: #{discriminator_forward.1} parent=0 // pred_fallthru
    _
  // Predicated region
  $region38: #{discriminator_forward.1} parent=0 // pred_check
    _
  $region39: #{discriminator_forward.1} parent=0 // pred_check_branch
    %993 = sbr.rel (0) target = $region41
  $region40: #{discriminator_forward.1} parent=0 // pred_region
    _
  $region41: #{discriminator_forward.1} parent=0 // pred_fallthru
    _

</llo_original>
